<compile_context>
chip_gen: v7x
topology: tpu7x:2x2x1
jax: 0.10.0
libtpu: 0.0.40
codegen_flags: <defaults>
</compile_context>

<pallas_src>
import functools

import jax
import jax.numpy as jnp
from jax.experimental import pallas as pl
from jax.experimental.pallas import tpu as pltpu


def _stable_sigmoid(x):
    # exp of a non-positive argument only -> never overflows, never NaN.
    # Reciprocal goes to the (otherwise idle) EUP slot.
    e = jnp.exp(-jnp.abs(x))
    inv = pl.reciprocal(1.0 + e, approx=True)
    return jnp.where(x >= 0, inv, e * inv)


def discriminator_kernel(x_ref,
                         w1_ref, b1_ref,
                         w2_ref, b2_ref,
                         w3_ref, b3_ref,
                         w4_ref, b4_ref,
                         o_ref):
    # Compute / epilogue dtype follows the weights (f32 default; bf16 on
    # v6e/v7x via cast_params).  Matmuls always accumulate in f32.
    act_dt = w1_ref.dtype

    def layer(h_in, w_ref, b_ref):
        h32 = jnp.dot(h_in, w_ref[...], preferred_element_type=jnp.float32)
        # Drop to act_dt BEFORE bias + LeakyReLU so the VALU epilogue runs on
        # packed bf16 vregs in the bf16 path; no-ops in the f32 path.
        t = h32.astype(act_dt) + b_ref[...].astype(act_dt)
        # LeakyReLU(0.2) as a single vmax (valid since 0 < slope < 1).
        # Dropout(0.3) -> identity in eval mode.
        return jnp.maximum(t, 0.2 * t)

    h = layer(x_ref[...].astype(act_dt), w1_ref, b1_ref)   # Linear(D, H)
    h = layer(h, w2_ref, b2_ref)                           # Linear(H, H)
    h = layer(h, w3_ref, b3_ref)                           # Linear(H, H)

    # Layer 4: Linear(H, 1) + Sigmoid.
    # w4 is the torch-native (1, H) row; contracting the last dims of
    # (1, H) x (batch_tile, H) yields a lane-dense (1, batch_tile) logits row
    # that matches the output block layout directly (unmasked stores).
    logits = jax.lax.dot_general(
        w4_ref[...], h,
        dimension_numbers=(((1,), (1,)), ((), ())),
        preferred_element_type=jnp.float32)                # (1, batch_tile)
    logits = logits + b4_ref[...]                          # (1,1) broadcast
    o_ref[0] = _stable_sigmoid(logits).astype(o_ref.dtype)


def _pick_batch_tile(B, batch_tile, max_tile):
    """Auto batch tile: amortize per-step overhead, keep >=2 grid steps when
    B allows (v7x has 2 TensorCores), round to a multiple of 256, cap so
    per-step VMEM stays far below v5e's 16 MiB default scoped limit."""
    if batch_tile is not None:
        return batch_tile
    half = -(-B // 2)                 # cdiv(B, 2)
    bt = -(-half // 256) * 256        # round up to multiple of 256
    return max(256, min(max_tile, bt))


@functools.partial(jax.jit, static_argnames=("batch_tile", "max_tile"))
def discriminator_forward(x, params, batch_tile=None, max_tile=2048):
    """x: (B, data_dim). params: dict of weights/biases (see init_params).

    Returns (B, 1) float32 probabilities, matching the PyTorch forward in
    eval mode.
    """
    B, D = x.shape
    H = params["w1"].shape[1]

    bt = _pick_batch_tile(B, batch_tile, max_tile)
    num_tiles = pl.cdiv(B, bt)
    # No jnp.pad for ragged B: the last grid block is partial; rows past B
    # read unspecified data but are independent and sliced off below.

    full = lambda i: (0, 0)  # weights/biases resident for every grid step

    out = pl.pallas_call(
        discriminator_kernel,
        # Lane-dense output slab: last dim = batch_tile (multiple of 128).
        out_shape=jax.ShapeDtypeStruct((num_tiles, 1, bt), jnp.float32),
        grid_spec=pl.GridSpec(
            grid=(num_tiles,),
            in_specs=[
                pl.BlockSpec((bt, D), lambda i: (i, 0)),   # x tile
                pl.BlockSpec((D, H), full),                # w1
                pl.BlockSpec((1, H), full),                # b1
                pl.BlockSpec((H, H), full),                # w2
                pl.BlockSpec((1, H), full),                # b2
                pl.BlockSpec((H, H), full),                # w3
                pl.BlockSpec((1, H), full),                # b3
                pl.BlockSpec((1, H), full),                # w4 (row)
                pl.BlockSpec((1, 1), full),                # b4
            ],
            out_specs=pl.BlockSpec((1, 1, bt), lambda i: (i, 0, 0)),
        ),
        compiler_params=pltpu.CompilerParams(
            dimension_semantics=("parallel",)),
    )(x, params["w1"], params["b1"], params["w2"], params["b2"],
      params["w3"], params["b3"], params["w4"], params["b4"])

    # Free layout plumbing: (num_tiles, 1, batch_tile) -> (B, 1).
    return out.reshape(-1)[:B].reshape(B, 1)


def init_params(key, data_dim, hidden_dim):
    """Deterministic init mimicking nn.Linear default (uniform +/- 1/sqrt(fan_in)).
    w1..w3 are stored pre-transposed (in_features, out_features); w4 is kept in
    torch-native (out_features=1, in_features) row form."""
    ks = jax.random.split(key, 8)

    def layer(kw, kb, fan_in, fan_out, transpose=True):
        bound = 1.0 / jnp.sqrt(fan_in)
        shape = (fan_in, fan_out) if transpose else (fan_out, fan_in)
        w = jax.random.uniform(kw, shape, jnp.float32, -bound, bound)
        b = jax.random.uniform(kb, (1, fan_out), jnp.float32, -bound, bound)
        return w, b

    w1, b1 = layer(ks[0], ks[1], data_dim, hidden_dim)
    w2, b2 = layer(ks[2], ks[3], hidden_dim, hidden_dim)
    w3, b3 = layer(ks[4], ks[5], hidden_dim, hidden_dim)
    w4, b4 = layer(ks[6], ks[7], hidden_dim, 1, transpose=False)  # (1, H), (1, 1)
    return dict(w1=w1, b1=b1, w2=w2, b2=b2, w3=w3, b3=b3, w4=w4, b4=b4)


def cast_params(params, dtype):
    """Cast matmul weights AND layer-1..3 biases to `dtype` (bf16 fast path for
    v6e/v7x packed epilogue).  Do NOT use on v5e (no bf16 VPU/EUP).  b4 stays
    f32 (final logits/sigmoid run in f32)."""
    out = dict(params)
    for k in ("w1", "w2", "w3", "w4", "b1", "b2", "b3"):
        out[k] = params[k].astype(dtype)
    return out


def reference_forward(x, p):
    lrelu = lambda t: jax.nn.leaky_relu(t, 0.2)
    h = lrelu(x @ p["w1"] + p["b1"])
    h = lrelu(h @ p["w2"] + p["b2"])
    h = lrelu(h @ p["w3"] + p["b3"])
    return jax.nn.sigmoid(h @ p["w4"].T + p["b4"])


if __name__ == "__main__":
    key = jax.random.PRNGKey(0)
    k_x, k_p = jax.random.split(key)

    batch, data_dim, hidden_dim = 512, 32, 256   # module default H=256
    x = jax.random.normal(k_x, (batch, data_dim), jnp.float32)
    params = init_params(k_p, data_dim, hidden_dim)
    ref = reference_forward(x, params)

    # f32 path, auto batch_tile (-> 256, 2 grid steps).  Tolerance covers the
    # EUP approximate reciprocal in the sigmoid.
    out = jax.block_until_ready(discriminator_forward(x, params))
    assert out.shape == (batch, 1), out.shape
    assert jnp.allclose(out, ref, atol=2e-3, rtol=2e-3), (
        f"max abs err {jnp.max(jnp.abs(out - ref))}")

    # Ragged batch (exercises the pad-free partial last block).
    out_r = jax.block_until_ready(discriminator_forward(x[:300], params))
    assert out_r.shape == (300, 1)
    assert jnp.allclose(out_r, ref[:300], atol=2e-3, rtol=2e-3), (
        f"max abs err {jnp.max(jnp.abs(out_r - ref[:300]))}")

    # Explicit batch_tile override (single-tile path).
    out_1t = jax.block_until_ready(
        discriminator_forward(x, params, batch_tile=512))
    assert out_1t.shape == (batch, 1)
    assert jnp.allclose(out_1t, ref, atol=2e-3, rtol=2e-3)

    # bf16 weight/activation + packed bf16 epilogue (v6e/v7x fast path),
    # f32 MXU accumulation.
    out_bf16 = jax.block_until_ready(
        discriminator_forward(x, cast_params(params, jnp.bfloat16)))
    assert out_bf16.shape == (batch, 1)
    assert float(jnp.max(jnp.abs(out_bf16 - ref))) < 5e-2

    print("KERNEL_OK")
</pallas_src>

<mosaic_0001>
module attributes {stable_mosaic.version = 11 : i64} {
  func.func @discriminator_kernel(%arg0: i32, %arg1: memref<256x32xf32, #tpu.memory_space<vmem>>, %arg2: memref<32x256xf32, #tpu.memory_space<vmem>>, %arg3: memref<1x256xf32, #tpu.memory_space<vmem>>, %arg4: memref<256x256xf32, #tpu.memory_space<vmem>>, %arg5: memref<1x256xf32, #tpu.memory_space<vmem>>, %arg6: memref<256x256xf32, #tpu.memory_space<vmem>>, %arg7: memref<1x256xf32, #tpu.memory_space<vmem>>, %arg8: memref<1x256xf32, #tpu.memory_space<vmem>>, %arg9: memref<1x1xf32, #tpu.memory_space<vmem>>, %arg10: memref<1x1x256xf32, #tpu.memory_space<vmem>>) attributes {dimension_semantics = [#tpu.dimension_semantics<parallel>], iteration_bounds = array<i64: 2>, scalar_prefetch = 0 : i64, scratch_operands = 0 : i64, tpu.core_type = #tpu.core_type<tc>, window_params = [{transform_indices = @transform_0, window_bounds = array<i64: 256, 32>}, {pipeline_mode = #tpu.pipeline_mode<synchronous>, transform_indices = @transform_1, window_bounds = array<i64: 32, 256>}, {pipeline_mode = #tpu.pipeline_mode<synchronous>, transform_indices = @transform_2, window_bounds = array<i64: 1, 256>}, {pipeline_mode = #tpu.pipeline_mode<synchronous>, transform_indices = @transform_3, window_bounds = array<i64: 256, 256>}, {pipeline_mode = #tpu.pipeline_mode<synchronous>, transform_indices = @transform_4, window_bounds = array<i64: 1, 256>}, {pipeline_mode = #tpu.pipeline_mode<synchronous>, transform_indices = @transform_5, window_bounds = array<i64: 256, 256>}, {pipeline_mode = #tpu.pipeline_mode<synchronous>, transform_indices = @transform_6, window_bounds = array<i64: 1, 256>}, {pipeline_mode = #tpu.pipeline_mode<synchronous>, transform_indices = @transform_7, window_bounds = array<i64: 1, 256>}, {pipeline_mode = #tpu.pipeline_mode<synchronous>, transform_indices = @transform_8, window_bounds = array<i64: 1, 1>}, {transform_indices = @transform_9, window_bounds = array<i64: 1, 1, 256>}]} {
    %c0 = arith.constant 0 : index
    %c0_0 = arith.constant 0 : index
    %0 = vector.load %arg1[%c0, %c0_0] : memref<256x32xf32, #tpu.memory_space<vmem>>, vector<256x32xf32>
    %c0_1 = arith.constant 0 : index
    %c0_2 = arith.constant 0 : index
    %1 = vector.load %arg2[%c0_1, %c0_2] : memref<32x256xf32, #tpu.memory_space<vmem>>, vector<32x256xf32>
    %cst = arith.constant dense<0.000000e+00> : vector<256x256xf32>
    %2 = tpu.matmul %0, %1, %cst {dimension_numbers = #tpu.dot_dimension_numbers<[1], [0], [0], [1], [0, 0, 1, 1], [], []>} : vector<256x32xf32>, vector<32x256xf32>, vector<256x256xf32> -> vector<256x256xf32>
    %c0_3 = arith.constant 0 : index
    %c0_4 = arith.constant 0 : index
    %3 = vector.load %arg3[%c0_3, %c0_4] : memref<1x256xf32, #tpu.memory_space<vmem>>, vector<1x256xf32>
    %4 = vector.broadcast %3 : vector<1x256xf32> to vector<256x256xf32>
    %5 = arith.addf %2, %4 : vector<256x256xf32>
    %cst_5 = arith.constant 2.000000e-01 : f32
    %6 = vector.broadcast %cst_5 : f32 to vector<256x256xf32>
    %7 = arith.mulf %6, %5 : vector<256x256xf32>
    %8 = arith.maximumf %5, %7 : vector<256x256xf32>
    %c0_6 = arith.constant 0 : index
    %c0_7 = arith.constant 0 : index
    %9 = vector.load %arg4[%c0_6, %c0_7] : memref<256x256xf32, #tpu.memory_space<vmem>>, vector<256x256xf32>
    %cst_8 = arith.constant dense<0.000000e+00> : vector<256x256xf32>
    %10 = tpu.matmul %8, %9, %cst_8 {dimension_numbers = #tpu.dot_dimension_numbers<[1], [0], [0], [1], [0, 0, 1, 1], [], []>} : vector<256x256xf32>, vector<256x256xf32>, vector<256x256xf32> -> vector<256x256xf32>
    %c0_9 = arith.constant 0 : index
    %c0_10 = arith.constant 0 : index
    %11 = vector.load %arg5[%c0_9, %c0_10] : memref<1x256xf32, #tpu.memory_space<vmem>>, vector<1x256xf32>
    %12 = vector.broadcast %11 : vector<1x256xf32> to vector<256x256xf32>
    %13 = arith.addf %10, %12 : vector<256x256xf32>
    %cst_11 = arith.constant 2.000000e-01 : f32
    %14 = vector.broadcast %cst_11 : f32 to vector<256x256xf32>
    %15 = arith.mulf %14, %13 : vector<256x256xf32>
    %16 = arith.maximumf %13, %15 : vector<256x256xf32>
    %c0_12 = arith.constant 0 : index
    %c0_13 = arith.constant 0 : index
    %17 = vector.load %arg6[%c0_12, %c0_13] : memref<256x256xf32, #tpu.memory_space<vmem>>, vector<256x256xf32>
    %cst_14 = arith.constant dense<0.000000e+00> : vector<256x256xf32>
    %18 = tpu.matmul %16, %17, %cst_14 {dimension_numbers = #tpu.dot_dimension_numbers<[1], [0], [0], [1], [0, 0, 1, 1], [], []>} : vector<256x256xf32>, vector<256x256xf32>, vector<256x256xf32> -> vector<256x256xf32>
    %c0_15 = arith.constant 0 : index
    %c0_16 = arith.constant 0 : index
    %19 = vector.load %arg7[%c0_15, %c0_16] : memref<1x256xf32, #tpu.memory_space<vmem>>, vector<1x256xf32>
    %20 = vector.broadcast %19 : vector<1x256xf32> to vector<256x256xf32>
    %21 = arith.addf %18, %20 : vector<256x256xf32>
    %cst_17 = arith.constant 2.000000e-01 : f32
    %22 = vector.broadcast %cst_17 : f32 to vector<256x256xf32>
    %23 = arith.mulf %22, %21 : vector<256x256xf32>
    %24 = arith.maximumf %21, %23 : vector<256x256xf32>
    %c0_18 = arith.constant 0 : index
    %c0_19 = arith.constant 0 : index
    %25 = vector.load %arg8[%c0_18, %c0_19] : memref<1x256xf32, #tpu.memory_space<vmem>>, vector<1x256xf32>
    %cst_20 = arith.constant dense<0.000000e+00> : vector<1x256xf32>
    %26 = tpu.matmul %25, %24, %cst_20 {dimension_numbers = #tpu.dot_dimension_numbers<[1], [1], [0], [0], [0, 0, 1, 0], [], []>} : vector<1x256xf32>, vector<256x256xf32>, vector<1x256xf32> -> vector<1x256xf32>
    %c0_21 = arith.constant 0 : index
    %c0_22 = arith.constant 0 : index
    %27 = vector.load %arg9[%c0_21, %c0_22] : memref<1x1xf32, #tpu.memory_space<vmem>>, vector<1x1xf32>
    %28 = vector.broadcast %27 : vector<1x1xf32> to vector<1x256xf32>
    %29 = arith.addf %26, %28 : vector<1x256xf32>
    %30 = math.absf %29 : vector<1x256xf32>
    %cst_23 = arith.constant 0.000000e+00 : f32
    %31 = vector.broadcast %cst_23 : f32 to vector<1x256xf32>
    %32 = arith.subf %31, %30 : vector<1x256xf32>
    %33 = math.exp %32 : vector<1x256xf32>
    %cst_24 = arith.constant 1.000000e+00 : f32
    %34 = vector.broadcast %cst_24 : f32 to vector<1x256xf32>
    %35 = arith.addf %34, %33 : vector<1x256xf32>
    %36 = tpu.reciprocal %35 {approx = true} : vector<1x256xf32> -> vector<1x256xf32>
    %cst_25 = arith.constant 0.000000e+00 : f32
    %37 = vector.broadcast %cst_25 : f32 to vector<1x256xf32>
    %38 = arith.cmpf oge, %29, %37 : vector<1x256xf32>
    %39 = arith.mulf %33, %36 : vector<1x256xf32>
    %40 = arith.select %38, %36, %39 : vector<1x256xi1>, vector<1x256xf32>
    %c0_26 = arith.constant 0 : index
    %c0_27 = arith.constant 0 : index
    %c0_28 = arith.constant 0 : index
    %41 = vector.load %arg10[%c0_26, %c0_27, %c0_28] : memref<1x1x256xf32, #tpu.memory_space<vmem>>, vector<1x1x256xf32>
    %42 = vector.shape_cast %41 : vector<1x1x256xf32> to vector<1x256xf32>
    %43 = vector.shape_cast %40 : vector<1x256xf32> to vector<1x1x256xf32>
    tpu.vector_store %arg10[%c0_26, %c0_27, %c0_28], %43 {strides = array<i32>} : memref<1x1x256xf32, #tpu.memory_space<vmem>>, vector<1x1x256xf32>,
    return
  }
  func.func @transform_0(%arg0: i32) -> (i32, i32) {
    %c0_i32 = arith.constant 0 : i32
    %c0_i32_0 = arith.constant 0 : i32
    return %arg0, %c0_i32 : i32, i32
  }
  func.func @transform_1(%arg0: i32) -> (i32, i32) {
    %c0_i32 = arith.constant 0 : i32
    %c0_i32_0 = arith.constant 0 : i32
    %c0_i32_1 = arith.constant 0 : i32
    return %c0_i32, %c0_i32_0 : i32, i32
  }
  func.func @transform_2(%arg0: i32) -> (i32, i32) {
    %c0_i32 = arith.constant 0 : i32
    %c0_i32_0 = arith.constant 0 : i32
    %c0_i32_1 = arith.constant 0 : i32
    return %c0_i32, %c0_i32_0 : i32, i32
  }
  func.func @transform_3(%arg0: i32) -> (i32, i32) {
    %c0_i32 = arith.constant 0 : i32
    %c0_i32_0 = arith.constant 0 : i32
    %c0_i32_1 = arith.constant 0 : i32
    return %c0_i32, %c0_i32_0 : i32, i32
  }
  func.func @transform_4(%arg0: i32) -> (i32, i32) {
    %c0_i32 = arith.constant 0 : i32
    %c0_i32_0 = arith.constant 0 : i32
    %c0_i32_1 = arith.constant 0 : i32
    return %c0_i32, %c0_i32_0 : i32, i32
  }
  func.func @transform_5(%arg0: i32) -> (i32, i32) {
    %c0_i32 = arith.constant 0 : i32
    %c0_i32_0 = arith.constant 0 : i32
    %c0_i32_1 = arith.constant 0 : i32
    return %c0_i32, %c0_i32_0 : i32, i32
  }
  func.func @transform_6(%arg0: i32) -> (i32, i32) {
    %c0_i32 = arith.constant 0 : i32
    %c0_i32_0 = arith.constant 0 : i32
    %c0_i32_1 = arith.constant 0 : i32
    return %c0_i32, %c0_i32_0 : i32, i32
  }
  func.func @transform_7(%arg0: i32) -> (i32, i32) {
    %c0_i32 = arith.constant 0 : i32
    %c0_i32_0 = arith.constant 0 : i32
    %c0_i32_1 = arith.constant 0 : i32
    return %c0_i32, %c0_i32_0 : i32, i32
  }
  func.func @transform_8(%arg0: i32) -> (i32, i32) {
    %c0_i32 = arith.constant 0 : i32
    %c0_i32_0 = arith.constant 0 : i32
    %c0_i32_1 = arith.constant 0 : i32
    return %c0_i32, %c0_i32_0 : i32, i32
  }
  func.func @transform_9(%arg0: i32) -> (i32, i32, i32) {
    %c0_i32 = arith.constant 0 : i32
    %c0_i32_0 = arith.constant 0 : i32
    %c0_i32_1 = arith.constant 0 : i32
    return %arg0, %c0_i32, %c0_i32_0 : i32, i32, i32
  }
}

</mosaic_0001>

<llo_original>
// kernel: discriminator_forward.1
$region0: #{discriminator_forward.1}
  #allocation0 [shape = 'u32[]', space=smem, size = 0x4, offset = 0x4, fixed_abs, tag = 'smem constant byte address 0x4 - core index']
  #allocation1 [shape = 'u32[144,128]{1,0:T(1,128)}', space=vmem, size = 0x12000, scoped, tag = 'internal scratch']
  #allocation2 [shape = 'f32[1,1]{1,0:T(1,128)S(1)}', space=vmem, size = 0x200, scoped, tag = 'scoped memory for discriminator_forward.1']
  %s0 = inlined_call_operand.vmem [shape: f32[512,32], index: 0, kind: input, shape index: {}]
  %s1 = inlined_call_operand.vmem [shape: f32[32,256], index: 1, kind: input, shape index: {}]
  %s2 = inlined_call_operand.vmem [shape: f32[1,256], index: 2, kind: input, shape index: {}]
  %s3 = inlined_call_operand.vmem [shape: f32[256,256], index: 3, kind: input, shape index: {}]
  %s4 = inlined_call_operand.vmem [shape: f32[1,256], index: 4, kind: input, shape index: {}]
  %s5 = inlined_call_operand.hbm [shape: f32[256,256], index: 5, kind: input, shape index: {}]
  %s6 = inlined_call_operand.vmem [shape: f32[1,256], index: 6, kind: input, shape index: {}]
  %s7 = inlined_call_operand.vmem [shape: f32[1,256], index: 7, kind: input, shape index: {}]
  %s8 = inlined_call_operand.<no memory space> [shape: f32[1,1], index: 8, kind: input, shape index: {}]
  %s9 = inlined_call_operand.hbm [shape: f32[2,1,256], index: 9, kind: output, shape index: {}]
  %s10 = sld [smem:[#allocation0]]
  $region73: #{discriminator_forward.1} parent=0
    _
  %s12 = ssub.s32 1, %s10
  %s13 = scalar_select 0, %s12, %s10
  %v14 = vstv %s8
  %15 = vst [vmem:[#allocation2] sm:$0x1] %v14
  $region1: #{discriminator_forward.1} parent=0
    #allocation3 [shape = 'u8[262144]{0}', space=vmem, size = 0x40000, scoped, tag = 'input window, operand 5, single buffered']
    #allocation4 [shape = 's32[2]{0}', space=sflag, size = 0x8, scoped, tag = 'scoped memory for discriminator_forward.1']
    #allocation5 [shape = 's32[2]{0}', space=sflag, size = 0x8, scoped, tag = 'scoped memory for discriminator_forward.1']
    #allocation6 [shape = 'u8[2048]{0}', space=vmem, size = 0x800, scoped, tag = 'output window, operand 0']
    %16 = vsyncpa [#allocation4], 0
    %17 = vsyncpa [#allocation5], 0
    %s18 = scalar_lea.sflag [#allocation5], 1
    %19 = vsyncpa %s18, 0
    loop: start=0, step=1, limit=4
    $region2: #{discriminator_forward.1} parent=1 // loop_pre_header
      _
    $region3: #{discriminator_forward.1} parent=1 // loop_header
      %s21 = sphi 0, %s25
      %p22 = scmp.ge.s32.totalorder %s21, 4
      %s31 = sphi 0, %s33
      %s34 = sphi 0, %s31
      %s35 = sphi 0, %s34
      %s51 = sphi 0, %s35
      %s55 = sphi 0, %s55
      %s57 = sphi 0, %s55
      %s58 = sphi 0, %s57
      %s72 = sphi 0, %s58
      %s76 = sphi 0, %s76
      %s78 = sphi 0, %s76
      %s79 = sphi 0, %s78
      %s93 = sphi 0, %s79
      %s97 = sphi 0, %s97
      %s99 = sphi 0, %s97
      %s100 = sphi 0, %s99
      %s114 = sphi 0, %s100
      %s118 = sphi 0, %s118
      %s120 = sphi 0, %s118
      %s121 = sphi 0, %s120
      %s135 = sphi 0, %s121
      %s139 = sphi 0, %s139
      %s141 = sphi 0, %s139
      %s142 = sphi 0, %s141
      %s156 = sphi 0, %s142
      %s160 = sphi 0, %s160
      %s162 = sphi 0, %s160
      %s163 = sphi 0, %s162
      %s177 = sphi 0, %s163
      %s181 = sphi 0, %s181
      %s183 = sphi 0, %s181
      %s184 = sphi 0, %s183
      %s198 = sphi 0, %s184
      %s202 = sphi 0, %s202
      %s204 = sphi 0, %s202
      %s205 = sphi 0, %s204
      %s219 = sphi 0, %s205
      %s225 = sphi 0, %s227
      %s228 = sphi 0, %s225
      %s229 = sphi 0, %s228
      %s245 = sphi 0, %s229
    $region4: #{discriminator_forward.1} parent=1 // loop_header_branch
      %24 = sbr.rel (%p22) target = $region8
    $region5: #{discriminator_forward.1} parent=1 // loop_body
      %s26 = ssub.s32 %s21, 1
      %s27 = ssub.s32 %s21, 2
      %s28 = sadd.s32 %s21, 1
      %s29 = ssub.s32 %s21, %s28
      %p30 = scmp.eq.s32.totalorder %s29, 0
      %s32 = sadd.s32 %s31, 1
      %s33 = scalar_select %p30, %s31, %s32
      %p36 = pneg %p30
      %p37 = scmp.eq.s32.totalorder %s21, 1
      %p38 = por %p36, %p37
      %p39 = scmp.ne.s32.totalorder %s31, %s34
      %p40 = scmp.eq.s32.totalorder %s21, 0
      %p41 = por %p39, %p40
      %p42 = scmp.ne.s32.totalorder %s31, %s34
      %p43 = scmp.eq.s32.totalorder %s26, 1
      %p44 = por %p42, %p43
      %p45 = scmp.ne.s32.totalorder %s34, %s35
      %p46 = scmp.eq.s32.totalorder %s26, 0
      %p47 = por %p45, %p46
      %p48 = scmp.ne.s32.totalorder %s34, %s35
      %p49 = scmp.eq.s32.totalorder %s27, 1
      %p50 = por %p48, %p49
      %p52 = scmp.ne.s32.totalorder %s35, %s51
      %p53 = scmp.eq.s32.totalorder %s27, 0
      %p54 = por %p52, %p53
      %s56 = sadd.s32 %s55, 1
      %p59 = scmp.eq.s32.totalorder %s21, 1
      %p60 = scmp.ne.s32.totalorder %s55, %s57
      %p61 = scmp.eq.s32.totalorder %s21, 0
      %p62 = por %p60, %p61
      %p63 = scmp.ne.s32.totalorder %s55, %s57
      %p64 = scmp.eq.s32.totalorder %s26, 1
      %p65 = por %p63, %p64
      %p66 = scmp.ne.s32.totalorder %s57, %s58
      %p67 = scmp.eq.s32.totalorder %s26, 0
      %p68 = por %p66, %p67
      %p69 = scmp.ne.s32.totalorder %s57, %s58
      %p70 = scmp.eq.s32.totalorder %s27, 1
      %p71 = por %p69, %p70
      %p73 = scmp.ne.s32.totalorder %s58, %s72
      %p74 = scmp.eq.s32.totalorder %s27, 0
      %p75 = por %p73, %p74
      %s77 = sadd.s32 %s76, 1
      %p80 = scmp.eq.s32.totalorder %s21, 1
      %p81 = scmp.ne.s32.totalorder %s76, %s78
      %p82 = scmp.eq.s32.totalorder %s21, 0
      %p83 = por %p81, %p82
      %p84 = scmp.ne.s32.totalorder %s76, %s78
      %p85 = scmp.eq.s32.totalorder %s26, 1
      %p86 = por %p84, %p85
      %p87 = scmp.ne.s32.totalorder %s78, %s79
      %p88 = scmp.eq.s32.totalorder %s26, 0
      %p89 = por %p87, %p88
      %p90 = scmp.ne.s32.totalorder %s78, %s79
      %p91 = scmp.eq.s32.totalorder %s27, 1
      %p92 = por %p90, %p91
      %p94 = scmp.ne.s32.totalorder %s79, %s93
      %p95 = scmp.eq.s32.totalorder %s27, 0
      %p96 = por %p94, %p95
      %s98 = sadd.s32 %s97, 1
      %p101 = scmp.eq.s32.totalorder %s21, 1
      %p102 = scmp.ne.s32.totalorder %s97, %s99
      %p103 = scmp.eq.s32.totalorder %s21, 0
      %p104 = por %p102, %p103
      %p105 = scmp.ne.s32.totalorder %s97, %s99
      %p106 = scmp.eq.s32.totalorder %s26, 1
      %p107 = por %p105, %p106
      %p108 = scmp.ne.s32.totalorder %s99, %s100
      %p109 = scmp.eq.s32.totalorder %s26, 0
      %p110 = por %p108, %p109
      %p111 = scmp.ne.s32.totalorder %s99, %s100
      %p112 = scmp.eq.s32.totalorder %s27, 1
      %p113 = por %p111, %p112
      %p115 = scmp.ne.s32.totalorder %s100, %s114
      %p116 = scmp.eq.s32.totalorder %s27, 0
      %p117 = por %p115, %p116
      %s119 = sadd.s32 %s118, 1
      %p122 = scmp.eq.s32.totalorder %s21, 1
      %p123 = scmp.ne.s32.totalorder %s118, %s120
      %p124 = scmp.eq.s32.totalorder %s21, 0
      %p125 = por %p123, %p124
      %p126 = scmp.ne.s32.totalorder %s118, %s120
      %p127 = scmp.eq.s32.totalorder %s26, 1
      %p128 = por %p126, %p127
      %p129 = scmp.ne.s32.totalorder %s120, %s121
      %p130 = scmp.eq.s32.totalorder %s26, 0
      %p131 = por %p129, %p130
      %p132 = scmp.ne.s32.totalorder %s120, %s121
      %p133 = scmp.eq.s32.totalorder %s27, 1
      %p134 = por %p132, %p133
      %p136 = scmp.ne.s32.totalorder %s121, %s135
      %p137 = scmp.eq.s32.totalorder %s27, 0
      %p138 = por %p136, %p137
      %s140 = sadd.s32 %s139, 1
      %p143 = scmp.eq.s32.totalorder %s21, 1
      %p144 = scmp.ne.s32.totalorder %s139, %s141
      %p145 = scmp.eq.s32.totalorder %s21, 0
      %p146 = por %p144, %p145
      %p147 = scmp.ne.s32.totalorder %s139, %s141
      %p148 = scmp.eq.s32.totalorder %s26, 1
      %p149 = por %p147, %p148
      %p150 = scmp.ne.s32.totalorder %s141, %s142
      %p151 = scmp.eq.s32.totalorder %s26, 0
      %p152 = por %p150, %p151
      %p153 = scmp.ne.s32.totalorder %s141, %s142
      %p154 = scmp.eq.s32.totalorder %s27, 1
      %p155 = por %p153, %p154
      %p157 = scmp.ne.s32.totalorder %s142, %s156
      %p158 = scmp.eq.s32.totalorder %s27, 0
      %p159 = por %p157, %p158
      %s161 = sadd.s32 %s160, 1
      %p164 = scmp.eq.s32.totalorder %s21, 1
      %p165 = scmp.ne.s32.totalorder %s160, %s162
      %p166 = scmp.eq.s32.totalorder %s21, 0
      %p167 = por %p165, %p166
      %p168 = scmp.ne.s32.totalorder %s160, %s162
      %p169 = scmp.eq.s32.totalorder %s26, 1
      %p170 = por %p168, %p169
      %p171 = scmp.ne.s32.totalorder %s162, %s163
      %p172 = scmp.eq.s32.totalorder %s26, 0
      %p173 = por %p171, %p172
      %p174 = scmp.ne.s32.totalorder %s162, %s163
      %p175 = scmp.eq.s32.totalorder %s27, 1
      %p176 = por %p174, %p175
      %p178 = scmp.ne.s32.totalorder %s163, %s177
      %p179 = scmp.eq.s32.totalorder %s27, 0
      %p180 = por %p178, %p179
      %s182 = sadd.s32 %s181, 1
      %p185 = scmp.eq.s32.totalorder %s21, 1
      %p186 = scmp.ne.s32.totalorder %s181, %s183
      %p187 = scmp.eq.s32.totalorder %s21, 0
      %p188 = por %p186, %p187
      %p189 = scmp.ne.s32.totalorder %s181, %s183
      %p190 = scmp.eq.s32.totalorder %s26, 1
      %p191 = por %p189, %p190
      %p192 = scmp.ne.s32.totalorder %s183, %s184
      %p193 = scmp.eq.s32.totalorder %s26, 0
      %p194 = por %p192, %p193
      %p195 = scmp.ne.s32.totalorder %s183, %s184
      %p196 = scmp.eq.s32.totalorder %s27, 1
      %p197 = por %p195, %p196
      %p199 = scmp.ne.s32.totalorder %s184, %s198
      %p200 = scmp.eq.s32.totalorder %s27, 0
      %p201 = por %p199, %p200
      %s203 = sadd.s32 %s202, 1
      %p206 = scmp.eq.s32.totalorder %s21, 1
      %p207 = scmp.ne.s32.totalorder %s202, %s204
      %p208 = scmp.eq.s32.totalorder %s21, 0
      %p209 = por %p207, %p208
      %p210 = scmp.ne.s32.totalorder %s202, %s204
      %p211 = scmp.eq.s32.totalorder %s26, 1
      %p212 = por %p210, %p211
      %p213 = scmp.ne.s32.totalorder %s204, %s205
      %p214 = scmp.eq.s32.totalorder %s26, 0
      %p215 = por %p213, %p214
      %p216 = scmp.ne.s32.totalorder %s204, %s205
      %p217 = scmp.eq.s32.totalorder %s27, 1
      %p218 = por %p216, %p217
      %p220 = scmp.ne.s32.totalorder %s205, %s219
      %p221 = scmp.eq.s32.totalorder %s27, 0
      %p222 = por %p220, %p221
      %s223 = ssub.s32 %s21, %s28
      %p224 = scmp.eq.s32.totalorder %s223, 0
      %s226 = sadd.s32 %s225, 1
      %s227 = scalar_select %p224, %s225, %s226
      %p230 = pneg %p224
      %p231 = scmp.eq.s32.totalorder %s21, 1
      %p232 = por %p230, %p231
      %p233 = scmp.ne.s32.totalorder %s225, %s228
      %p234 = scmp.eq.s32.totalorder %s21, 0
      %p235 = por %p233, %p234
      %p236 = scmp.ne.s32.totalorder %s225, %s228
      %p237 = scmp.eq.s32.totalorder %s26, 1
      %p238 = por %p236, %p237
      %p239 = scmp.ne.s32.totalorder %s228, %s229
      %p240 = scmp.eq.s32.totalorder %s26, 0
      %p241 = por %p239, %p240
      %p242 = scmp.ne.s32.totalorder %s228, %s229
      %p243 = scmp.eq.s32.totalorder %s27, 1
      %p244 = por %p242, %p243
      %p246 = scmp.ne.s32.totalorder %s229, %s245
      %p247 = scmp.eq.s32.totalorder %s27, 0
      %p248 = por %p246, %p247
      %p249 = scmp.le.s32.totalorder 1, %s21
      %p250 = scmp.lt.s32.totalorder %s21, 3
      %p251 = pnand %p249, %p250
      %p252 = pneg %p251
      // Predicated region
      $region9: #{discriminator_forward.1} parent=5 // pred_check
        _
      $region10: #{discriminator_forward.1} parent=5 // pred_check_branch
        %254 = sbr.rel (%p251) target = $region12
      $region11: #{discriminator_forward.1} parent=5 // pred_region
        %s255 = ssub.s32 %s21, 1
        // Predicated region
        $region13: #{discriminator_forward.1} parent=11 // pred_check
          %p256 = pneg %p68
        $region14: #{discriminator_forward.1} parent=11 // pred_check_branch
          %258 = sbr.rel (%p256) target = $region16
        $region15: #{discriminator_forward.1} parent=11 // pred_region
          _
        $region16: #{discriminator_forward.1} parent=11 // pred_fallthru
          _
        // Predicated region
        $region17: #{discriminator_forward.1} parent=11 // pred_check
          %p259 = pneg %p89
        $region18: #{discriminator_forward.1} parent=11 // pred_check_branch
          %261 = sbr.rel (%p259) target = $region20
        $region19: #{discriminator_forward.1} parent=11 // pred_region
          _
        $region20: #{discriminator_forward.1} parent=11 // pred_fallthru
          _
        // Predicated region
        $region21: #{discriminator_forward.1} parent=11 // pred_check
          %p262 = pneg %p110
        $region22: #{discriminator_forward.1} parent=11 // pred_check_branch
          %264 = sbr.rel (%p262) target = $region24
        $region23: #{discriminator_forward.1} parent=11 // pred_region
          _
        $region24: #{discriminator_forward.1} parent=11 // pred_fallthru
          _
        // Predicated region
        $region25: #{discriminator_forward.1} parent=11 // pred_check
          %p265 = pneg %p131
        $region26: #{discriminator_forward.1} parent=11 // pred_check_branch
          %267 = sbr.rel (%p265) target = $region28
        $region27: #{discriminator_forward.1} parent=11 // pred_region
          _
        $region28: #{discriminator_forward.1} parent=11 // pred_fallthru
          _
        // Predicated region
        $region29: #{discriminator_forward.1} parent=11 // pred_check
          %p268 = pneg %p152
        $region30: #{discriminator_forward.1} parent=11 // pred_check_branch
          %270 = sbr.rel (%p268) target = $region32
        $region31: #{discriminator_forward.1} parent=11 // pred_region
          %s272 = ssub.s32 8192, 8192
          %273 = vsyncadd [#allocation4], %s272
          %s274 = sshll.u32 [#allocation3], 4
          %s275 = int_to_ptr.vmem [resolvable:$true] %s274
          %280 = dma.hbm_to_vmem [thread:$0]  %s5, 8192, %s275, [#allocation4], 256, 256, 16
        $region32: #{discriminator_forward.1} parent=11 // pred_fallthru
          _
        // Predicated region
        $region33: #{discriminator_forward.1} parent=11 // pred_check
          %p281 = pneg %p173
        $region34: #{discriminator_forward.1} parent=11 // pred_check_branch
          %283 = sbr.rel (%p281) target = $region36
        $region35: #{discriminator_forward.1} parent=11 // pred_region
          _
        $region36: #{discriminator_forward.1} parent=11 // pred_fallthru
          _
        // Predicated region
        $region37: #{discriminator_forward.1} parent=11 // pred_check
          %p284 = pneg %p194
        $region38: #{discriminator_forward.1} parent=11 // pred_check_branch
          %286 = sbr.rel (%p284) target = $region40
        $region39: #{discriminator_forward.1} parent=11 // pred_region
          _
        $region40: #{discriminator_forward.1} parent=11 // pred_fallthru
          _
        // Predicated region
        $region41: #{discriminator_forward.1} parent=11 // pred_check
          %p287 = pneg %p215
        $region42: #{discriminator_forward.1} parent=11 // pred_check_branch
          %289 = sbr.rel (%p287) target = $region44
        $region43: #{discriminator_forward.1} parent=11 // pred_region
          _
        $region44: #{discriminator_forward.1} parent=11 // pred_fallthru
          _
      $region12: #{discriminator_forward.1} parent=5 // pred_fallthru
        _
      %p290 = scmp.lt.s32.totalorder %s21, 2
      // Predicated region
      $region45: #{discriminator_forward.1} parent=5 // pred_check
        %p291 = pneg %p290
      $region46: #{discriminator_forward.1} parent=5 // pred_check_branch
        %293 = sbr.rel (%p291) target = $region48
      $region47: #{discriminator_forward.1} parent=5 // pred_region
        // Predicated region
        $region49: #{discriminator_forward.1} parent=47 // pred_check
          %p294 = pneg %p41
        $region50: #{discriminator_forward.1} parent=47 // pred_check_branch
          %296 = sbr.rel (%p294) target = $region52
        $region51: #{discriminator_forward.1} parent=47 // pred_region
          %s297 = smul.u32 32, %s21
          %p298 = scmp.lt.s32.totalorder %s297, 63
          %s299 = scalar_select %p298, %s297, 63
          %s300 = smul.addr %s299, 8
          %s301 = scalar_lea.vmem %s0, %s300
          %s302 = smul.u32 32, %s21
        $region52: #{discriminator_forward.1} parent=47 // pred_fallthru
          _
      $region48: #{discriminator_forward.1} parent=5 // pred_fallthru
        _
      %p303 = scmp.le.s32.totalorder 1, %s21
      %p304 = scmp.lt.s32.totalorder %s21, 3
      %p305 = pnand %p303, %p304
      %p306 = pneg %p305
      // Predicated region
      $region53: #{discriminator_forward.1} parent=5 // pred_check
        _
      $region54: #{discriminator_forward.1} parent=5 // pred_check_branch
        %308 = sbr.rel (%p305) target = $region56
      $region55: #{discriminator_forward.1} parent=5 // pred_region
        %s309 = ssub.s32 %s21, 1
        // Predicated region
        $region57: #{discriminator_forward.1} parent=55 // pred_check
          %p310 = pneg %p152
        $region58: #{discriminator_forward.1} parent=55 // pred_check_branch
          %312 = sbr.rel (%p310) target = $region60
        $region59: #{discriminator_forward.1} parent=55 // pred_region
          %313 = dma.done [#allocation4], 8192
        $region60: #{discriminator_forward.1} parent=55 // pred_fallthru
          _
        %s314 = smul.u32 32, %s26
        %p315 = scmp.lt.s32.totalorder %s314, 63
        %s316 = scalar_select %p315, %s314, 63
        %s317 = smul.addr %s316, 8
        %s318 = scalar_lea.vmem %s0, %s317
        %p319 = pneg %p47
        %p320 = pneg %p44
        %p321 = pneg %p68
        %p322 = pneg %p65
        %p323 = pneg %p89
        %p324 = pneg %p86
        %p325 = pneg %p110
        %p326 = pneg %p107
        %p327 = pneg %p131
        %p328 = pneg %p128
        %p329 = pneg %p152
        %p330 = pneg %p149
        %p331 = pneg %p173
        %p332 = pneg %p170
        %p333 = pneg %p194
        %p334 = pneg %p191
        %p335 = pneg %p215
        %p336 = pneg %p212
        %p337 = pneg %p241
        %p338 = pneg %p238
        %s339 = sand.u32 %s228, 1
        %s340 = scalar_lea.sflag [#allocation5], %s339
        %s341 = sand.u32 %s228, 1
        %s342 = smul.addr %s341, 2
        %s343 = scalar_lea.vmem [#allocation6], %s342
        %s344 = smul.u32 32, %s26
        %p345 = scmp.lt.s32.totalorder %s344, 63
        %s346 = scalar_select %p345, %s344, 63
        %s347 = smul.addr %s346, 8
        %s348 = scalar_lea.vmem %s0, %s347
        %s349 = smul.u32 32, %s26
        %v350 = vld [vmem:[%s348] sm:$0xff]
        %v351 = vld [vmem:[%s348 + $0x8] sm:$0xff]
        %v352 = vld [vmem:[%s348 + $0x10] sm:$0xff]
        %v353 = vld [vmem:[%s348 + $0x18] sm:$0xff]
        %v354 = vld [vmem:[%s348 + $0x20] sm:$0xff]
        %v355 = vld [vmem:[%s348 + $0x28] sm:$0xff]
        %v356 = vld [vmem:[%s348 + $0x30] sm:$0xff]
        %v357 = vld [vmem:[%s348 + $0x38] sm:$0xff]
        %v358 = vld [vmem:[%s348 + $0x40] sm:$0xff]
        %v359 = vld [vmem:[%s348 + $0x48] sm:$0xff]
        %v360 = vld [vmem:[%s348 + $0x50] sm:$0xff]
        %v361 = vld [vmem:[%s348 + $0x58] sm:$0xff]
        %v362 = vld [vmem:[%s348 + $0x60] sm:$0xff]
        %v363 = vld [vmem:[%s348 + $0x68] sm:$0xff]
        %v364 = vld [vmem:[%s348 + $0x70] sm:$0xff]
        %v365 = vld [vmem:[%s348 + $0x78] sm:$0xff]
        %v366 = vld [vmem:[%s348 + $0x80] sm:$0xff]
        %v367 = vld [vmem:[%s348 + $0x88] sm:$0xff]
        %v368 = vld [vmem:[%s348 + $0x90] sm:$0xff]
        %v369 = vld [vmem:[%s348 + $0x98] sm:$0xff]
        %v370 = vld [vmem:[%s348 + $0xa0] sm:$0xff]
        %v371 = vld [vmem:[%s348 + $0xa8] sm:$0xff]
        %v372 = vld [vmem:[%s348 + $0xb0] sm:$0xff]
        %v373 = vld [vmem:[%s348 + $0xb8] sm:$0xff]
        %v374 = vld [vmem:[%s348 + $0xc0] sm:$0xff]
        %v375 = vld [vmem:[%s348 + $0xc8] sm:$0xff]
        %v376 = vld [vmem:[%s348 + $0xd0] sm:$0xff]
        %v377 = vld [vmem:[%s348 + $0xd8] sm:$0xff]
        %v378 = vld [vmem:[%s348 + $0xe0] sm:$0xff]
        %v379 = vld [vmem:[%s348 + $0xe8] sm:$0xff]
        %v380 = vld [vmem:[%s348 + $0xf0] sm:$0xff]
        %v381 = vld [vmem:[%s348 + $0xf8] sm:$0xff]
        %v382 = vld [vmem:[%s1] sm:$0xff]
        %v383 = vld [vmem:[%s1 + $0x8] sm:$0xff]
        %v384 = vld [vmem:[%s1 + $0x10] sm:$0xff]
        %v385 = vld [vmem:[%s1 + $0x18] sm:$0xff]
        %v386 = vld [vmem:[%s1 + $0x20] sm:$0xff]
        %v387 = vld [vmem:[%s1 + $0x28] sm:$0xff]
        %v388 = vld [vmem:[%s1 + $0x30] sm:$0xff]
        %v389 = vld [vmem:[%s1 + $0x38] sm:$0xff]
        %v390 = vld [vmem:[%s2] sm:$0x3]
        %v392 = vlaneseq
        %v393 = vshrl.u32 %v392, 7
        %v394 = vsub.s32 0, %v393
        %v395 = vrot.slane %v390, %v394
        %v396 = vlaneseq
        %v397 = vshrl.u32 %v396, 7
        %v398 = vsub.s32 1, %v397
        %v399 = vrot.slane %v390, %v398
        %vm402 = vcmask 261120
        %v404 = vsel %vm402, %v350, 0
        %v407 = vsel %vm402, %v351, 0
        %v410 = vsel %vm402, %v352, 0
        %v413 = vsel %vm402, %v353, 0
        %v416 = vsel %vm402, %v354, 0
        %v419 = vsel %vm402, %v355, 0
        %v422 = vsel %vm402, %v356, 0
        %v425 = vsel %vm402, %v357, 0
        %v428 = vsel %vm402, %v358, 0
        %v431 = vsel %vm402, %v359, 0
        %v434 = vsel %vm402, %v360, 0
        %v437 = vsel %vm402, %v361, 0
        %v440 = vsel %vm402, %v362, 0
        %v443 = vsel %vm402, %v363, 0
        %v446 = vsel %vm402, %v364, 0
        %v449 = vsel %vm402, %v365, 0
        %v452 = vsel %vm402, %v366, 0
        %v455 = vsel %vm402, %v367, 0
        %v458 = vsel %vm402, %v368, 0
        %v461 = vsel %vm402, %v369, 0
        %v464 = vsel %vm402, %v370, 0
        %v467 = vsel %vm402, %v371, 0
        %v470 = vsel %vm402, %v372, 0
        %v473 = vsel %vm402, %v373, 0
        %v476 = vsel %vm402, %v374, 0
        %v479 = vsel %vm402, %v375, 0
        %v482 = vsel %vm402, %v376, 0
        %v485 = vsel %vm402, %v377, 0
        %v488 = vsel %vm402, %v378, 0
        %v491 = vsel %vm402, %v379, 0
        %v494 = vsel %vm402, %v380, 0
        %v497 = vsel %vm402, %v381, 0
        %499 = vmatprep.subr.mxu0 %v383
        %500 = vmatpush1.msra.mxu0 %v382
        %501 = vmatprep.subr.mxu0 %v385
        %502 = vmatpush1.msra.mxu0 %v384
        %503 = vmatprep.subr.mxu0 %v387
        %504 = vmatpush1.msra.mxu0 %v386
        %505 = vmatprep.subr.mxu0 %v389
        %506 = vmatpush1.msra.mxu0 %v388
        %507 = vmatprep.subr.mxu0 0.0
        %508 = vmatpush1.msra.mxu0 0.0
        %509 = vmatprep.subr.mxu0 0.0
        %510 = vmatpush1.msra.mxu0 0.0
        %511 = vmatprep.subr.mxu0 0.0
        %512 = vmatpush1.msra.mxu0 0.0
        %513 = vmatprep.subr.mxu0 0.0
        %514 = vmatpush1.msra.mxu0 0.0
        %515 = vmatprep.subr.mxu0 0.0
        %516 = vmatpush1.msra.mxu0 0.0
        %517 = vmatprep.subr.mxu0 0.0
        %518 = vmatpush1.msra.mxu0 0.0
        %519 = vmatprep.subr.mxu0 0.0
        %520 = vmatpush1.msra.mxu0 0.0
        %521 = vmatprep.subr.mxu0 0.0
        %522 = vmatpush1.msra.mxu0 0.0
        %523 = vmatprep.subr.mxu0 0.0
        %524 = vmatpush1.msra.mxu0 0.0
        %525 = vmatprep.subr.mxu0 0.0
        %526 = vmatpush1.msra.mxu0 0.0
        %527 = vmatprep.subr.mxu0 0.0
        %528 = vmatpush1.msra.mxu0 0.0
        %529 = vmatprep.subr.mxu0 0.0
        %530 = vmatpush1.msra.mxu0 0.0
        %531 = vmatprep.subr.mxu0 0.0
        %532 = vmatpush1.msra.mxu0 0.0
        %533 = vmatprep.subr.mxu0 0.0
        %534 = vmatpush1.msra.mxu0 0.0
        %535 = vmatprep.subr.mxu0 0.0
        %536 = vmatpush1.msra.mxu0 0.0
        %537 = vmatprep.subr.mxu0 0.0
        %538 = vmatpush1.msra.mxu0 0.0
        %539 = vmatprep.subr.mxu0 0.0
        %540 = vmatpush1.msra.mxu0 0.0
        %541 = vmatprep.subr.mxu0 0.0
        %542 = vmatpush1.msra.mxu0 0.0
        %543 = vmatprep.subr.mxu0 0.0
        %544 = vmatpush1.msra.mxu0 0.0
        %545 = vmatprep.subr.mxu0 0.0
        %546 = vmatpush1.msra.mxu0 0.0
        %547 = vmatprep.subr.mxu0 0.0
        %548 = vmatpush1.msra.mxu0 0.0
        %549 = vmatprep.subr.mxu0 0.0
        %550 = vmatpush1.msra.mxu0 0.0
        %551 = vmatprep.subr.mxu0 0.0
        %552 = vmatpush1.msra.mxu0 0.0
        %553 = vmatprep.subr.mxu0 0.0
        %554 = vmatpush1.msra.mxu0 0.0
        %555 = vmatprep.subr.mxu0 0.0
        %556 = vmatpush1.msra.mxu0 0.0
        %557 = vmatprep.subr.mxu0 0.0
        %558 = vmatpush1.msra.mxu0 0.0
        %559 = vmatprep.subr.mxu0 0.0
        %560 = vmatpush1.msra.mxu0 0.0
        %561 = vmatprep.subr.mxu0 0.0
        %562 = vmatpush1.msra.mxu0 0.0
        %563 = vmatprep.mubr.f32.mxu0 0.0
        %564 = vmatmul.mubr.f32.gmra.mrb[0].mxu0 %v404
        %v565 = vpop.f32.mrb[0].mxu0
        %v566 = vadd.f32 %v395, %v565
        %v567 = vpop.f32.mrb[0].mxu0
        %v568 = vadd.f32 %v399, %v567
        %569 = vmatprep.mubr.f32.mxu0 0.0
        %570 = vmatmul.mubr.f32.gmra.mrb[0].mxu0 %v407
        %v571 = vpop.f32.mrb[0].mxu0
        %v572 = vadd.f32 %v395, %v571
        %v573 = vpop.f32.mrb[0].mxu0
        %v574 = vadd.f32 %v399, %v573
        %575 = vmatprep.mubr.f32.mxu0 0.0
        %576 = vmatmul.mubr.f32.gmra.mrb[0].mxu0 %v410
        %v577 = vpop.f32.mrb[0].mxu0
        %v578 = vadd.f32 %v395, %v577
        %v579 = vpop.f32.mrb[0].mxu0
        %v580 = vadd.f32 %v399, %v579
        %581 = vmatprep.mubr.f32.mxu0 0.0
        %582 = vmatmul.mubr.f32.gmra.mrb[0].mxu0 %v413
        %v583 = vpop.f32.mrb[0].mxu0
        %v584 = vadd.f32 %v395, %v583
        %v585 = vpop.f32.mrb[0].mxu0
        %v586 = vadd.f32 %v399, %v585
        %587 = vmatprep.mubr.f32.mxu0 0.0
        %588 = vmatmul.mubr.f32.gmra.mrb[0].mxu0 %v416
        %v589 = vpop.f32.mrb[0].mxu0
        %v590 = vadd.f32 %v395, %v589
        %v591 = vpop.f32.mrb[0].mxu0
        %v592 = vadd.f32 %v399, %v591
        %593 = vmatprep.mubr.f32.mxu0 0.0
        %594 = vmatmul.mubr.f32.gmra.mrb[0].mxu0 %v419
        %v595 = vpop.f32.mrb[0].mxu0
        %v596 = vadd.f32 %v395, %v595
        %v597 = vpop.f32.mrb[0].mxu0
        %v598 = vadd.f32 %v399, %v597
        %599 = vmatprep.mubr.f32.mxu0 0.0
        %600 = vmatmul.mubr.f32.gmra.mrb[0].mxu0 %v422
        %v601 = vpop.f32.mrb[0].mxu0
        %v602 = vadd.f32 %v395, %v601
        %v603 = vpop.f32.mrb[0].mxu0
        %v604 = vadd.f32 %v399, %v603
        %605 = vmatprep.mubr.f32.mxu0 0.0
        %606 = vmatmul.mubr.f32.gmra.mrb[0].mxu0 %v425
        %v607 = vpop.f32.mrb[0].mxu0
        %v608 = vadd.f32 %v395, %v607
        %v609 = vpop.f32.mrb[0].mxu0
        %v610 = vadd.f32 %v399, %v609
        %611 = vmatprep.mubr.f32.mxu0 0.0
        %612 = vmatmul.mubr.f32.gmra.mrb[0].mxu0 %v428
        %v613 = vpop.f32.mrb[0].mxu0
        %v614 = vadd.f32 %v395, %v613
        %v615 = vpop.f32.mrb[0].mxu0
        %v616 = vadd.f32 %v399, %v615
        %617 = vmatprep.mubr.f32.mxu0 0.0
        %618 = vmatmul.mubr.f32.gmra.mrb[0].mxu0 %v431
        %v619 = vpop.f32.mrb[0].mxu0
        %v620 = vadd.f32 %v395, %v619
        %v621 = vpop.f32.mrb[0].mxu0
        %v622 = vadd.f32 %v399, %v621
        %623 = vmatprep.mubr.f32.mxu0 0.0
        %624 = vmatmul.mubr.f32.gmra.mrb[0].mxu0 %v434
        %v625 = vpop.f32.mrb[0].mxu0
        %v626 = vadd.f32 %v395, %v625
        %v627 = vpop.f32.mrb[0].mxu0
        %v628 = vadd.f32 %v399, %v627
        %629 = vmatprep.mubr.f32.mxu0 0.0
        %630 = vmatmul.mubr.f32.gmra.mrb[0].mxu0 %v437
        %v631 = vpop.f32.mrb[0].mxu0
        %v632 = vadd.f32 %v395, %v631
        %v633 = vpop.f32.mrb[0].mxu0
        %v634 = vadd.f32 %v399, %v633
        %635 = vmatprep.mubr.f32.mxu0 0.0
        %636 = vmatmul.mubr.f32.gmra.mrb[0].mxu0 %v440
        %v637 = vpop.f32.mrb[0].mxu0
        %v638 = vadd.f32 %v395, %v637
        %v639 = vpop.f32.mrb[0].mxu0
        %v640 = vadd.f32 %v399, %v639
        %641 = vmatprep.mubr.f32.mxu0 0.0
        %642 = vmatmul.mubr.f32.gmra.mrb[0].mxu0 %v443
        %v643 = vpop.f32.mrb[0].mxu0
        %v644 = vadd.f32 %v395, %v643
        %v645 = vpop.f32.mrb[0].mxu0
        %v646 = vadd.f32 %v399, %v645
        %647 = vmatprep.mubr.f32.mxu0 0.0
        %648 = vmatmul.mubr.f32.gmra.mrb[0].mxu0 %v446
        %v649 = vpop.f32.mrb[0].mxu0
        %v650 = vadd.f32 %v395, %v649
        %v651 = vpop.f32.mrb[0].mxu0
        %v652 = vadd.f32 %v399, %v651
        %653 = vmatprep.mubr.f32.mxu0 0.0
        %654 = vmatmul.mubr.f32.gmra.mrb[0].mxu0 %v449
        %v655 = vpop.f32.mrb[0].mxu0
        %v656 = vadd.f32 %v395, %v655
        %v657 = vpop.f32.mrb[0].mxu0
        %v658 = vadd.f32 %v399, %v657
        %659 = vmatprep.mubr.f32.mxu0 0.0
        %660 = vmatmul.mubr.f32.gmra.mrb[0].mxu0 %v452
        %v661 = vpop.f32.mrb[0].mxu0
        %v662 = vadd.f32 %v395, %v661
        %v663 = vpop.f32.mrb[0].mxu0
        %v664 = vadd.f32 %v399, %v663
        %665 = vmatprep.mubr.f32.mxu0 0.0
        %666 = vmatmul.mubr.f32.gmra.mrb[0].mxu0 %v455
        %v667 = vpop.f32.mrb[0].mxu0
        %v668 = vadd.f32 %v395, %v667
        %v669 = vpop.f32.mrb[0].mxu0
        %v670 = vadd.f32 %v399, %v669
        %671 = vmatprep.mubr.f32.mxu0 0.0
        %672 = vmatmul.mubr.f32.gmra.mrb[0].mxu0 %v458
        %v673 = vpop.f32.mrb[0].mxu0
        %v674 = vadd.f32 %v395, %v673
        %v675 = vpop.f32.mrb[0].mxu0
        %v676 = vadd.f32 %v399, %v675
        %677 = vmatprep.mubr.f32.mxu0 0.0
        %678 = vmatmul.mubr.f32.gmra.mrb[0].mxu0 %v461
        %v679 = vpop.f32.mrb[0].mxu0
        %v680 = vadd.f32 %v395, %v679
        %v681 = vpop.f32.mrb[0].mxu0
        %v682 = vadd.f32 %v399, %v681
        %683 = vmatprep.mubr.f32.mxu0 0.0
        %684 = vmatmul.mubr.f32.gmra.mrb[0].mxu0 %v464
        %v685 = vpop.f32.mrb[0].mxu0
        %v686 = vadd.f32 %v395, %v685
        %v687 = vpop.f32.mrb[0].mxu0
        %v688 = vadd.f32 %v399, %v687
        %689 = vmatprep.mubr.f32.mxu0 0.0
        %690 = vmatmul.mubr.f32.gmra.mrb[0].mxu0 %v467
        %v691 = vpop.f32.mrb[0].mxu0
        %v692 = vadd.f32 %v395, %v691
        %v693 = vpop.f32.mrb[0].mxu0
        %v694 = vadd.f32 %v399, %v693
        %695 = vmatprep.mubr.f32.mxu0 0.0
        %696 = vmatmul.mubr.f32.gmra.mrb[0].mxu0 %v470
        %v697 = vpop.f32.mrb[0].mxu0
        %v698 = vadd.f32 %v395, %v697
        %v699 = vpop.f32.mrb[0].mxu0
        %v700 = vadd.f32 %v399, %v699
        %701 = vmatprep.mubr.f32.mxu0 0.0
        %702 = vmatmul.mubr.f32.gmra.mrb[0].mxu0 %v473
        %v703 = vpop.f32.mrb[0].mxu0
        %v704 = vadd.f32 %v395, %v703
        %v705 = vpop.f32.mrb[0].mxu0
        %v706 = vadd.f32 %v399, %v705
        %707 = vmatprep.mubr.f32.mxu0 0.0
        %708 = vmatmul.mubr.f32.gmra.mrb[0].mxu0 %v476
        %v709 = vpop.f32.mrb[0].mxu0
        %v710 = vadd.f32 %v395, %v709
        %v711 = vpop.f32.mrb[0].mxu0
        %v712 = vadd.f32 %v399, %v711
        %713 = vmatprep.mubr.f32.mxu0 0.0
        %714 = vmatmul.mubr.f32.gmra.mrb[0].mxu0 %v479
        %v715 = vpop.f32.mrb[0].mxu0
        %v716 = vadd.f32 %v395, %v715
        %v717 = vpop.f32.mrb[0].mxu0
        %v718 = vadd.f32 %v399, %v717
        %719 = vmatprep.mubr.f32.mxu0 0.0
        %720 = vmatmul.mubr.f32.gmra.mrb[0].mxu0 %v482
        %v721 = vpop.f32.mrb[0].mxu0
        %v722 = vadd.f32 %v395, %v721
        %v723 = vpop.f32.mrb[0].mxu0
        %v724 = vadd.f32 %v399, %v723
        %725 = vmatprep.mubr.f32.mxu0 0.0
        %726 = vmatmul.mubr.f32.gmra.mrb[0].mxu0 %v485
        %v727 = vpop.f32.mrb[0].mxu0
        %v728 = vadd.f32 %v395, %v727
        %v729 = vpop.f32.mrb[0].mxu0
        %v730 = vadd.f32 %v399, %v729
        %731 = vmatprep.mubr.f32.mxu0 0.0
        %732 = vmatmul.mubr.f32.gmra.mrb[0].mxu0 %v488
        %v733 = vpop.f32.mrb[0].mxu0
        %v734 = vadd.f32 %v395, %v733
        %v735 = vpop.f32.mrb[0].mxu0
        %v736 = vadd.f32 %v399, %v735
        %737 = vmatprep.mubr.f32.mxu0 0.0
        %738 = vmatmul.mubr.f32.gmra.mrb[0].mxu0 %v491
        %v739 = vpop.f32.mrb[0].mxu0
        %v740 = vadd.f32 %v395, %v739
        %v741 = vpop.f32.mrb[0].mxu0
        %v742 = vadd.f32 %v399, %v741
        %743 = vmatprep.mubr.f32.mxu0 0.0
        %744 = vmatmul.mubr.f32.gmra.mrb[0].mxu0 %v494
        %v745 = vpop.f32.mrb[0].mxu0
        %v746 = vadd.f32 %v395, %v745
        %v747 = vpop.f32.mrb[0].mxu0
        %v748 = vadd.f32 %v399, %v747
        %749 = vmatprep.mubr.f32.mxu0 0.0
        %750 = vmatmul.mubr.f32.gmra.mrb[0].mxu0 %v497
        %v751 = vpop.f32.mrb[0].mxu0
        %v752 = vadd.f32 %v395, %v751
        %v753 = vpop.f32.mrb[0].mxu0
        %v754 = vadd.f32 %v399, %v753
        %755 = vdwg.mxu0
        %v756 = vmul.f32 %v566, 0.2
        %v757 = vmul.f32 %v568, 0.2
        %v758 = vmul.f32 %v572, 0.2
        %v759 = vmul.f32 %v574, 0.2
        %v760 = vmul.f32 %v578, 0.2
        %v761 = vmul.f32 %v580, 0.2
        %v762 = vmul.f32 %v584, 0.2
        %v763 = vmul.f32 %v586, 0.2
        %v764 = vmul.f32 %v590, 0.2
        %v765 = vmul.f32 %v592, 0.2
        %v766 = vmul.f32 %v596, 0.2
        %v767 = vmul.f32 %v598, 0.2
        %v768 = vmul.f32 %v602, 0.2
        %v769 = vmul.f32 %v604, 0.2
        %v770 = vmul.f32 %v608, 0.2
        %v771 = vmul.f32 %v610, 0.2
        %v772 = vmul.f32 %v614, 0.2
        %v773 = vmul.f32 %v616, 0.2
        %v774 = vmul.f32 %v620, 0.2
        %v775 = vmul.f32 %v622, 0.2
        %v776 = vmul.f32 %v626, 0.2
        %v777 = vmul.f32 %v628, 0.2
        %v778 = vmul.f32 %v632, 0.2
        %v779 = vmul.f32 %v634, 0.2
        %v780 = vmul.f32 %v638, 0.2
        %v781 = vmul.f32 %v640, 0.2
        %v782 = vmul.f32 %v644, 0.2
        %v783 = vmul.f32 %v646, 0.2
        %v784 = vmul.f32 %v650, 0.2
        %v785 = vmul.f32 %v652, 0.2
        %v786 = vmul.f32 %v656, 0.2
        %v787 = vmul.f32 %v658, 0.2
        %v788 = vmul.f32 %v662, 0.2
        %v789 = vmul.f32 %v664, 0.2
        %v790 = vmul.f32 %v668, 0.2
        %v791 = vmul.f32 %v670, 0.2
        %v792 = vmul.f32 %v674, 0.2
        %v793 = vmul.f32 %v676, 0.2
        %v794 = vmul.f32 %v680, 0.2
        %v795 = vmul.f32 %v682, 0.2
        %v796 = vmul.f32 %v686, 0.2
        %v797 = vmul.f32 %v688, 0.2
        %v798 = vmul.f32 %v692, 0.2
        %v799 = vmul.f32 %v694, 0.2
        %v800 = vmul.f32 %v698, 0.2
        %v801 = vmul.f32 %v700, 0.2
        %v802 = vmul.f32 %v704, 0.2
        %v803 = vmul.f32 %v706, 0.2
        %v804 = vmul.f32 %v710, 0.2
        %v805 = vmul.f32 %v712, 0.2
        %v806 = vmul.f32 %v716, 0.2
        %v807 = vmul.f32 %v718, 0.2
        %v808 = vmul.f32 %v722, 0.2
        %v809 = vmul.f32 %v724, 0.2
        %v810 = vmul.f32 %v728, 0.2
        %v811 = vmul.f32 %v730, 0.2
        %v812 = vmul.f32 %v734, 0.2
        %v813 = vmul.f32 %v736, 0.2
        %v814 = vmul.f32 %v740, 0.2
        %v815 = vmul.f32 %v742, 0.2
        %v816 = vmul.f32 %v746, 0.2
        %v817 = vmul.f32 %v748, 0.2
        %v818 = vmul.f32 %v752, 0.2
        %v819 = vmul.f32 %v754, 0.2
        %v820 = vmax.f32 %v566, %v756
        %v821 = vmax.f32 %v568, %v757
        %v822 = vmax.f32 %v572, %v758
        %v823 = vmax.f32 %v574, %v759
        %v824 = vmax.f32 %v578, %v760
        %v825 = vmax.f32 %v580, %v761
        %v826 = vmax.f32 %v584, %v762
        %v827 = vmax.f32 %v586, %v763
        %v828 = vmax.f32 %v590, %v764
        %v829 = vmax.f32 %v592, %v765
        %v830 = vmax.f32 %v596, %v766
        %v831 = vmax.f32 %v598, %v767
        %v832 = vmax.f32 %v602, %v768
        %v833 = vmax.f32 %v604, %v769
        %v834 = vmax.f32 %v608, %v770
        %v835 = vmax.f32 %v610, %v771
        %v836 = vmax.f32 %v614, %v772
        %v837 = vmax.f32 %v616, %v773
        %v838 = vmax.f32 %v620, %v774
        %v839 = vmax.f32 %v622, %v775
        %v840 = vmax.f32 %v626, %v776
        %v841 = vmax.f32 %v628, %v777
        %v842 = vmax.f32 %v632, %v778
        %v843 = vmax.f32 %v634, %v779
        %v844 = vmax.f32 %v638, %v780
        %v845 = vmax.f32 %v640, %v781
        %v846 = vmax.f32 %v644, %v782
        %v847 = vmax.f32 %v646, %v783
        %v848 = vmax.f32 %v650, %v784
        %v849 = vmax.f32 %v652, %v785
        %v850 = vmax.f32 %v656, %v786
        %v851 = vmax.f32 %v658, %v787
        %v852 = vmax.f32 %v662, %v788
        %v853 = vmax.f32 %v664, %v789
        %v854 = vmax.f32 %v668, %v790
        %v855 = vmax.f32 %v670, %v791
        %v856 = vmax.f32 %v674, %v792
        %v857 = vmax.f32 %v676, %v793
        %v858 = vmax.f32 %v680, %v794
        %v859 = vmax.f32 %v682, %v795
        %v860 = vmax.f32 %v686, %v796
        %v861 = vmax.f32 %v688, %v797
        %v862 = vmax.f32 %v692, %v798
        %v863 = vmax.f32 %v694, %v799
        %v864 = vmax.f32 %v698, %v800
        %v865 = vmax.f32 %v700, %v801
        %v866 = vmax.f32 %v704, %v802
        %v867 = vmax.f32 %v706, %v803
        %v868 = vmax.f32 %v710, %v804
        %v869 = vmax.f32 %v712, %v805
        %v870 = vmax.f32 %v716, %v806
        %v871 = vmax.f32 %v718, %v807
        %v872 = vmax.f32 %v722, %v808
        %v873 = vmax.f32 %v724, %v809
        %v874 = vmax.f32 %v728, %v810
        %v875 = vmax.f32 %v730, %v811
        %v876 = vmax.f32 %v734, %v812
        %v877 = vmax.f32 %v736, %v813
        %v878 = vmax.f32 %v740, %v814
        %v879 = vmax.f32 %v742, %v815
        %v880 = vmax.f32 %v746, %v816
        %v881 = vmax.f32 %v748, %v817
        %v882 = vmax.f32 %v752, %v818
        %v883 = vmax.f32 %v754, %v819
        %v884 = vld [vmem:[%s3] sm:$0xff]
        %v885 = vld [vmem:[%s3 + $0x8] sm:$0xff]
        %v886 = vld [vmem:[%s3 + $0x10] sm:$0xff]
        %v887 = vld [vmem:[%s3 + $0x18] sm:$0xff]
        %v888 = vld [vmem:[%s3 + $0x20] sm:$0xff]
        %v889 = vld [vmem:[%s3 + $0x28] sm:$0xff]
        %v890 = vld [vmem:[%s3 + $0x30] sm:$0xff]
        %v891 = vld [vmem:[%s3 + $0x38] sm:$0xff]
        %v892 = vld [vmem:[%s3 + $0x40] sm:$0xff]
        %v893 = vld [vmem:[%s3 + $0x48] sm:$0xff]
        %v894 = vld [vmem:[%s3 + $0x50] sm:$0xff]
        %v895 = vld [vmem:[%s3 + $0x58] sm:$0xff]
        %v896 = vld [vmem:[%s3 + $0x60] sm:$0xff]
        %v897 = vld [vmem:[%s3 + $0x68] sm:$0xff]
        %v898 = vld [vmem:[%s3 + $0x70] sm:$0xff]
        %v899 = vld [vmem:[%s3 + $0x78] sm:$0xff]
        %v900 = vld [vmem:[%s3 + $0x80] sm:$0xff]
        %v901 = vld [vmem:[%s3 + $0x88] sm:$0xff]
        %v902 = vld [vmem:[%s3 + $0x90] sm:$0xff]
        %v903 = vld [vmem:[%s3 + $0x98] sm:$0xff]
        %v904 = vld [vmem:[%s3 + $0xa0] sm:$0xff]
        %v905 = vld [vmem:[%s3 + $0xa8] sm:$0xff]
        %v906 = vld [vmem:[%s3 + $0xb0] sm:$0xff]
        %v907 = vld [vmem:[%s3 + $0xb8] sm:$0xff]
        %v908 = vld [vmem:[%s3 + $0xc0] sm:$0xff]
        %v909 = vld [vmem:[%s3 + $0xc8] sm:$0xff]
        %v910 = vld [vmem:[%s3 + $0xd0] sm:$0xff]
        %v911 = vld [vmem:[%s3 + $0xd8] sm:$0xff]
        %v912 = vld [vmem:[%s3 + $0xe0] sm:$0xff]
        %v913 = vld [vmem:[%s3 + $0xe8] sm:$0xff]
        %v914 = vld [vmem:[%s3 + $0xf0] sm:$0xff]
        %v915 = vld [vmem:[%s3 + $0xf8] sm:$0xff]
        %v916 = vld [vmem:[%s3 + $0x100] sm:$0xff]
        %v917 = vld [vmem:[%s3 + $0x108] sm:$0xff]
        %v918 = vld [vmem:[%s3 + $0x110] sm:$0xff]
        %v919 = vld [vmem:[%s3 + $0x118] sm:$0xff]
        %v920 = vld [vmem:[%s3 + $0x120] sm:$0xff]
        %v921 = vld [vmem:[%s3 + $0x128] sm:$0xff]
        %v922 = vld [vmem:[%s3 + $0x130] sm:$0xff]
        %v923 = vld [vmem:[%s3 + $0x138] sm:$0xff]
        %v924 = vld [vmem:[%s3 + $0x140] sm:$0xff]
        %v925 = vld [vmem:[%s3 + $0x148] sm:$0xff]
        %v926 = vld [vmem:[%s3 + $0x150] sm:$0xff]
        %v927 = vld [vmem:[%s3 + $0x158] sm:$0xff]
        %v928 = vld [vmem:[%s3 + $0x160] sm:$0xff]
        %v929 = vld [vmem:[%s3 + $0x168] sm:$0xff]
        %v930 = vld [vmem:[%s3 + $0x170] sm:$0xff]
        %v931 = vld [vmem:[%s3 + $0x178] sm:$0xff]
        %v932 = vld [vmem:[%s3 + $0x180] sm:$0xff]
        %v933 = vld [vmem:[%s3 + $0x188] sm:$0xff]
        %v934 = vld [vmem:[%s3 + $0x190] sm:$0xff]
        %v935 = vld [vmem:[%s3 + $0x198] sm:$0xff]
        %v936 = vld [vmem:[%s3 + $0x1a0] sm:$0xff]
        %v937 = vld [vmem:[%s3 + $0x1a8] sm:$0xff]
        %v938 = vld [vmem:[%s3 + $0x1b0] sm:$0xff]
        %v939 = vld [vmem:[%s3 + $0x1b8] sm:$0xff]
        %v940 = vld [vmem:[%s3 + $0x1c0] sm:$0xff]
        %v941 = vld [vmem:[%s3 + $0x1c8] sm:$0xff]
        %v942 = vld [vmem:[%s3 + $0x1d0] sm:$0xff]
        %v943 = vld [vmem:[%s3 + $0x1d8] sm:$0xff]
        %v944 = vld [vmem:[%s3 + $0x1e0] sm:$0xff]
        %v945 = vld [vmem:[%s3 + $0x1e8] sm:$0xff]
        %v946 = vld [vmem:[%s3 + $0x1f0] sm:$0xff]
        %v947 = vld [vmem:[%s3 + $0x1f8] sm:$0xff]
        %v948 = vld [vmem:[%s4] sm:$0x3]
        %v950 = vlaneseq
        %v951 = vshrl.u32 %v950, 7
        %v952 = vsub.s32 0, %v951
        %v953 = vrot.slane %v948, %v952
        %v954 = vlaneseq
        %v955 = vshrl.u32 %v954, 7
        %v956 = vsub.s32 1, %v955
        %v957 = vrot.slane %v948, %v956
        %960 = vmatprep.subr.mxu0 %v885
        %961 = vmatpush1.msra.mxu0 %v884
        %962 = vmatprep.subr.mxu0 %v887
        %963 = vmatpush1.msra.mxu0 %v886
        %964 = vmatprep.subr.mxu0 %v889
        %965 = vmatpush1.msra.mxu0 %v888
        %966 = vmatprep.subr.mxu0 %v891
        %967 = vmatpush1.msra.mxu0 %v890
        %968 = vmatprep.subr.mxu0 %v893
        %969 = vmatpush1.msra.mxu0 %v892
        %970 = vmatprep.subr.mxu0 %v895
        %971 = vmatpush1.msra.mxu0 %v894
        %972 = vmatprep.subr.mxu0 %v897
        %973 = vmatpush1.msra.mxu0 %v896
        %974 = vmatprep.subr.mxu0 %v899
        %975 = vmatpush1.msra.mxu0 %v898
        %976 = vmatprep.subr.mxu0 %v901
        %977 = vmatpush1.msra.mxu0 %v900
        %978 = vmatprep.subr.mxu0 %v903
        %979 = vmatpush1.msra.mxu0 %v902
        %980 = vmatprep.subr.mxu0 %v905
        %981 = vmatpush1.msra.mxu0 %v904
        %982 = vmatprep.subr.mxu0 %v907
        %983 = vmatpush1.msra.mxu0 %v906
        %984 = vmatprep.subr.mxu0 %v909
        %985 = vmatpush1.msra.mxu0 %v908
        %986 = vmatprep.subr.mxu0 %v911
        %987 = vmatpush1.msra.mxu0 %v910
        %988 = vmatprep.subr.mxu0 %v913
        %989 = vmatpush1.msra.mxu0 %v912
        %990 = vmatprep.subr.mxu0 %v915
        %991 = vmatpush1.msra.mxu0 %v914
        %992 = vmatprep.subr.mxu0 %v917
        %993 = vmatpush1.msra.mxu0 %v916
        %994 = vmatprep.subr.mxu0 %v919
        %995 = vmatpush1.msra.mxu0 %v918
        %996 = vmatprep.subr.mxu0 %v921
        %997 = vmatpush1.msra.mxu0 %v920
        %998 = vmatprep.subr.mxu0 %v923
        %999 = vmatpush1.msra.mxu0 %v922
        %1000 = vmatprep.subr.mxu0 %v925
        %1001 = vmatpush1.msra.mxu0 %v924
        %1002 = vmatprep.subr.mxu0 %v927
        %1003 = vmatpush1.msra.mxu0 %v926
        %1004 = vmatprep.subr.mxu0 %v929
        %1005 = vmatpush1.msra.mxu0 %v928
        %1006 = vmatprep.subr.mxu0 %v931
        %1007 = vmatpush1.msra.mxu0 %v930
        %1008 = vmatprep.subr.mxu0 %v933
        %1009 = vmatpush1.msra.mxu0 %v932
        %1010 = vmatprep.subr.mxu0 %v935
        %1011 = vmatpush1.msra.mxu0 %v934
        %1012 = vmatprep.subr.mxu0 %v937
        %1013 = vmatpush1.msra.mxu0 %v936
        %1014 = vmatprep.subr.mxu0 %v939
        %1015 = vmatpush1.msra.mxu0 %v938
        %1016 = vmatprep.subr.mxu0 %v941
        %1017 = vmatpush1.msra.mxu0 %v940
        %1018 = vmatprep.subr.mxu0 %v943
        %1019 = vmatpush1.msra.mxu0 %v942
        %1020 = vmatprep.subr.mxu0 %v945
        %1021 = vmatpush1.msra.mxu0 %v944
        %1022 = vmatprep.subr.mxu0 %v947
        %1023 = vmatpush1.msra.mxu0 %v946
        %1024 = vmatprep.mubr.f32.mxu0 %v821
        %1025 = vmatmul.mubr.f32.gmra.mrb[0].mxu0 %v820
        %v1026 = vpop.f32.mrb[0].mxu0
        %v1027 = vadd.f32 %v953, %v1026
        %v1028 = vpop.f32.mrb[0].mxu0
        %v1029 = vadd.f32 %v957, %v1028
        %1030 = vmatprep.mubr.f32.mxu0 %v823
        %1031 = vmatmul.mubr.f32.gmra.mrb[0].mxu0 %v822
        %v1032 = vpop.f32.mrb[0].mxu0
        %v1033 = vadd.f32 %v953, %v1032
        %v1034 = vpop.f32.mrb[0].mxu0
        %v1035 = vadd.f32 %v957, %v1034
        %1036 = vmatprep.mubr.f32.mxu0 %v825
        %1037 = vmatmul.mubr.f32.gmra.mrb[0].mxu0 %v824
        %v1038 = vpop.f32.mrb[0].mxu0
        %v1039 = vadd.f32 %v953, %v1038
        %v1040 = vpop.f32.mrb[0].mxu0
        %v1041 = vadd.f32 %v957, %v1040
        %1042 = vmatprep.mubr.f32.mxu0 %v827
        %1043 = vmatmul.mubr.f32.gmra.mrb[0].mxu0 %v826
        %v1044 = vpop.f32.mrb[0].mxu0
        %v1045 = vadd.f32 %v953, %v1044
        %v1046 = vpop.f32.mrb[0].mxu0
        %v1047 = vadd.f32 %v957, %v1046
        %1048 = vmatprep.mubr.f32.mxu0 %v829
        %1049 = vmatmul.mubr.f32.gmra.mrb[0].mxu0 %v828
        %v1050 = vpop.f32.mrb[0].mxu0
        %v1051 = vadd.f32 %v953, %v1050
        %v1052 = vpop.f32.mrb[0].mxu0
        %v1053 = vadd.f32 %v957, %v1052
        %1054 = vmatprep.mubr.f32.mxu0 %v831
        %1055 = vmatmul.mubr.f32.gmra.mrb[0].mxu0 %v830
        %v1056 = vpop.f32.mrb[0].mxu0
        %v1057 = vadd.f32 %v953, %v1056
        %v1058 = vpop.f32.mrb[0].mxu0
        %v1059 = vadd.f32 %v957, %v1058
        %1060 = vmatprep.mubr.f32.mxu0 %v833
        %1061 = vmatmul.mubr.f32.gmra.mrb[0].mxu0 %v832
        %v1062 = vpop.f32.mrb[0].mxu0
        %v1063 = vadd.f32 %v953, %v1062
        %v1064 = vpop.f32.mrb[0].mxu0
        %v1065 = vadd.f32 %v957, %v1064
        %1066 = vmatprep.mubr.f32.mxu0 %v835
        %1067 = vmatmul.mubr.f32.gmra.mrb[0].mxu0 %v834
        %v1068 = vpop.f32.mrb[0].mxu0
        %v1069 = vadd.f32 %v953, %v1068
        %v1070 = vpop.f32.mrb[0].mxu0
        %v1071 = vadd.f32 %v957, %v1070
        %1072 = vmatprep.mubr.f32.mxu0 %v837
        %1073 = vmatmul.mubr.f32.gmra.mrb[0].mxu0 %v836
        %v1074 = vpop.f32.mrb[0].mxu0
        %v1075 = vadd.f32 %v953, %v1074
        %v1076 = vpop.f32.mrb[0].mxu0
        %v1077 = vadd.f32 %v957, %v1076
        %1078 = vmatprep.mubr.f32.mxu0 %v839
        %1079 = vmatmul.mubr.f32.gmra.mrb[0].mxu0 %v838
        %v1080 = vpop.f32.mrb[0].mxu0
        %v1081 = vadd.f32 %v953, %v1080
        %v1082 = vpop.f32.mrb[0].mxu0
        %v1083 = vadd.f32 %v957, %v1082
        %1084 = vmatprep.mubr.f32.mxu0 %v841
        %1085 = vmatmul.mubr.f32.gmra.mrb[0].mxu0 %v840
        %v1086 = vpop.f32.mrb[0].mxu0
        %v1087 = vadd.f32 %v953, %v1086
        %v1088 = vpop.f32.mrb[0].mxu0
        %v1089 = vadd.f32 %v957, %v1088
        %1090 = vmatprep.mubr.f32.mxu0 %v843
        %1091 = vmatmul.mubr.f32.gmra.mrb[0].mxu0 %v842
        %v1092 = vpop.f32.mrb[0].mxu0
        %v1093 = vadd.f32 %v953, %v1092
        %v1094 = vpop.f32.mrb[0].mxu0
        %v1095 = vadd.f32 %v957, %v1094
        %1096 = vmatprep.mubr.f32.mxu0 %v845
        %1097 = vmatmul.mubr.f32.gmra.mrb[0].mxu0 %v844
        %v1098 = vpop.f32.mrb[0].mxu0
        %v1099 = vadd.f32 %v953, %v1098
        %v1100 = vpop.f32.mrb[0].mxu0
        %v1101 = vadd.f32 %v957, %v1100
        %1102 = vmatprep.mubr.f32.mxu0 %v847
        %1103 = vmatmul.mubr.f32.gmra.mrb[0].mxu0 %v846
        %v1104 = vpop.f32.mrb[0].mxu0
        %v1105 = vadd.f32 %v953, %v1104
        %v1106 = vpop.f32.mrb[0].mxu0
        %v1107 = vadd.f32 %v957, %v1106
        %1108 = vmatprep.mubr.f32.mxu0 %v849
        %1109 = vmatmul.mubr.f32.gmra.mrb[0].mxu0 %v848
        %v1110 = vpop.f32.mrb[0].mxu0
        %v1111 = vadd.f32 %v953, %v1110
        %v1112 = vpop.f32.mrb[0].mxu0
        %v1113 = vadd.f32 %v957, %v1112
        %1114 = vmatprep.mubr.f32.mxu0 %v851
        %1115 = vmatmul.mubr.f32.gmra.mrb[0].mxu0 %v850
        %v1116 = vpop.f32.mrb[0].mxu0
        %v1117 = vadd.f32 %v953, %v1116
        %v1118 = vpop.f32.mrb[0].mxu0
        %v1119 = vadd.f32 %v957, %v1118
        %1120 = vmatprep.mubr.f32.mxu0 %v853
        %1121 = vmatmul.mubr.f32.gmra.mrb[0].mxu0 %v852
        %v1122 = vpop.f32.mrb[0].mxu0
        %v1123 = vadd.f32 %v953, %v1122
        %v1124 = vpop.f32.mrb[0].mxu0
        %v1125 = vadd.f32 %v957, %v1124
        %1126 = vmatprep.mubr.f32.mxu0 %v855
        %1127 = vmatmul.mubr.f32.gmra.mrb[0].mxu0 %v854
        %v1128 = vpop.f32.mrb[0].mxu0
        %v1129 = vadd.f32 %v953, %v1128
        %v1130 = vpop.f32.mrb[0].mxu0
        %v1131 = vadd.f32 %v957, %v1130
        %1132 = vmatprep.mubr.f32.mxu0 %v857
        %1133 = vmatmul.mubr.f32.gmra.mrb[0].mxu0 %v856
        %v1134 = vpop.f32.mrb[0].mxu0
        %v1135 = vadd.f32 %v953, %v1134
        %v1136 = vpop.f32.mrb[0].mxu0
        %v1137 = vadd.f32 %v957, %v1136
        %1138 = vmatprep.mubr.f32.mxu0 %v859
        %1139 = vmatmul.mubr.f32.gmra.mrb[0].mxu0 %v858
        %v1140 = vpop.f32.mrb[0].mxu0
        %v1141 = vadd.f32 %v953, %v1140
        %v1142 = vpop.f32.mrb[0].mxu0
        %v1143 = vadd.f32 %v957, %v1142
        %1144 = vmatprep.mubr.f32.mxu0 %v861
        %1145 = vmatmul.mubr.f32.gmra.mrb[0].mxu0 %v860
        %v1146 = vpop.f32.mrb[0].mxu0
        %v1147 = vadd.f32 %v953, %v1146
        %v1148 = vpop.f32.mrb[0].mxu0
        %v1149 = vadd.f32 %v957, %v1148
        %1150 = vmatprep.mubr.f32.mxu0 %v863
        %1151 = vmatmul.mubr.f32.gmra.mrb[0].mxu0 %v862
        %v1152 = vpop.f32.mrb[0].mxu0
        %v1153 = vadd.f32 %v953, %v1152
        %v1154 = vpop.f32.mrb[0].mxu0
        %v1155 = vadd.f32 %v957, %v1154
        %1156 = vmatprep.mubr.f32.mxu0 %v865
        %1157 = vmatmul.mubr.f32.gmra.mrb[0].mxu0 %v864
        %v1158 = vpop.f32.mrb[0].mxu0
        %v1159 = vadd.f32 %v953, %v1158
        %v1160 = vpop.f32.mrb[0].mxu0
        %v1161 = vadd.f32 %v957, %v1160
        %1162 = vmatprep.mubr.f32.mxu0 %v867
        %1163 = vmatmul.mubr.f32.gmra.mrb[0].mxu0 %v866
        %v1164 = vpop.f32.mrb[0].mxu0
        %v1165 = vadd.f32 %v953, %v1164
        %v1166 = vpop.f32.mrb[0].mxu0
        %v1167 = vadd.f32 %v957, %v1166
        %1168 = vmatprep.mubr.f32.mxu0 %v869
        %1169 = vmatmul.mubr.f32.gmra.mrb[0].mxu0 %v868
        %v1170 = vpop.f32.mrb[0].mxu0
        %v1171 = vadd.f32 %v953, %v1170
        %v1172 = vpop.f32.mrb[0].mxu0
        %v1173 = vadd.f32 %v957, %v1172
        %1174 = vmatprep.mubr.f32.mxu0 %v871
        %1175 = vmatmul.mubr.f32.gmra.mrb[0].mxu0 %v870
        %v1176 = vpop.f32.mrb[0].mxu0
        %v1177 = vadd.f32 %v953, %v1176
        %v1178 = vpop.f32.mrb[0].mxu0
        %v1179 = vadd.f32 %v957, %v1178
        %1180 = vmatprep.mubr.f32.mxu0 %v873
        %1181 = vmatmul.mubr.f32.gmra.mrb[0].mxu0 %v872
        %v1182 = vpop.f32.mrb[0].mxu0
        %v1183 = vadd.f32 %v953, %v1182
        %v1184 = vpop.f32.mrb[0].mxu0
        %v1185 = vadd.f32 %v957, %v1184
        %1186 = vmatprep.mubr.f32.mxu0 %v875
        %1187 = vmatmul.mubr.f32.gmra.mrb[0].mxu0 %v874
        %v1188 = vpop.f32.mrb[0].mxu0
        %v1189 = vadd.f32 %v953, %v1188
        %v1190 = vpop.f32.mrb[0].mxu0
        %v1191 = vadd.f32 %v957, %v1190
        %1192 = vmatprep.mubr.f32.mxu0 %v877
        %1193 = vmatmul.mubr.f32.gmra.mrb[0].mxu0 %v876
        %v1194 = vpop.f32.mrb[0].mxu0
        %v1195 = vadd.f32 %v953, %v1194
        %v1196 = vpop.f32.mrb[0].mxu0
        %v1197 = vadd.f32 %v957, %v1196
        %1198 = vmatprep.mubr.f32.mxu0 %v879
        %1199 = vmatmul.mubr.f32.gmra.mrb[0].mxu0 %v878
        %v1200 = vpop.f32.mrb[0].mxu0
        %v1201 = vadd.f32 %v953, %v1200
        %v1202 = vpop.f32.mrb[0].mxu0
        %v1203 = vadd.f32 %v957, %v1202
        %1204 = vmatprep.mubr.f32.mxu0 %v881
        %1205 = vmatmul.mubr.f32.gmra.mrb[0].mxu0 %v880
        %v1206 = vpop.f32.mrb[0].mxu0
        %v1207 = vadd.f32 %v953, %v1206
        %v1208 = vpop.f32.mrb[0].mxu0
        %v1209 = vadd.f32 %v957, %v1208
        %1210 = vmatprep.mubr.f32.mxu0 %v883
        %1211 = vmatmul.mubr.f32.gmra.mrb[0].mxu0 %v882
        %v1212 = vpop.f32.mrb[0].mxu0
        %v1213 = vadd.f32 %v953, %v1212
        %v1214 = vpop.f32.mrb[0].mxu0
        %v1215 = vadd.f32 %v957, %v1214
        %1216 = vdwg.mxu0
        %v1217 = vmul.f32 %v1027, 0.2
        %v1218 = vmul.f32 %v1029, 0.2
        %v1219 = vmul.f32 %v1033, 0.2
        %v1220 = vmul.f32 %v1035, 0.2
        %v1221 = vmul.f32 %v1039, 0.2
        %v1222 = vmul.f32 %v1041, 0.2
        %v1223 = vmul.f32 %v1045, 0.2
        %v1224 = vmul.f32 %v1047, 0.2
        %v1225 = vmul.f32 %v1051, 0.2
        %v1226 = vmul.f32 %v1053, 0.2
        %v1227 = vmul.f32 %v1057, 0.2
        %v1228 = vmul.f32 %v1059, 0.2
        %v1229 = vmul.f32 %v1063, 0.2
        %v1230 = vmul.f32 %v1065, 0.2
        %v1231 = vmul.f32 %v1069, 0.2
        %v1232 = vmul.f32 %v1071, 0.2
        %v1233 = vmul.f32 %v1075, 0.2
        %v1234 = vmul.f32 %v1077, 0.2
        %v1235 = vmul.f32 %v1081, 0.2
        %v1236 = vmul.f32 %v1083, 0.2
        %v1237 = vmul.f32 %v1087, 0.2
        %v1238 = vmul.f32 %v1089, 0.2
        %v1239 = vmul.f32 %v1093, 0.2
        %v1240 = vmul.f32 %v1095, 0.2
        %v1241 = vmul.f32 %v1099, 0.2
        %v1242 = vmul.f32 %v1101, 0.2
        %v1243 = vmul.f32 %v1105, 0.2
        %v1244 = vmul.f32 %v1107, 0.2
        %v1245 = vmul.f32 %v1111, 0.2
        %v1246 = vmul.f32 %v1113, 0.2
        %v1247 = vmul.f32 %v1117, 0.2
        %v1248 = vmul.f32 %v1119, 0.2
        %v1249 = vmul.f32 %v1123, 0.2
        %v1250 = vmul.f32 %v1125, 0.2
        %v1251 = vmul.f32 %v1129, 0.2
        %v1252 = vmul.f32 %v1131, 0.2
        %v1253 = vmul.f32 %v1135, 0.2
        %v1254 = vmul.f32 %v1137, 0.2
        %v1255 = vmul.f32 %v1141, 0.2
        %v1256 = vmul.f32 %v1143, 0.2
        %v1257 = vmul.f32 %v1147, 0.2
        %v1258 = vmul.f32 %v1149, 0.2
        %v1259 = vmul.f32 %v1153, 0.2
        %v1260 = vmul.f32 %v1155, 0.2
        %v1261 = vmul.f32 %v1159, 0.2
        %v1262 = vmul.f32 %v1161, 0.2
        %v1263 = vmul.f32 %v1165, 0.2
        %v1264 = vmul.f32 %v1167, 0.2
        %v1265 = vmul.f32 %v1171, 0.2
        %v1266 = vmul.f32 %v1173, 0.2
        %v1267 = vmul.f32 %v1177, 0.2
        %v1268 = vmul.f32 %v1179, 0.2
        %v1269 = vmul.f32 %v1183, 0.2
        %v1270 = vmul.f32 %v1185, 0.2
        %v1271 = vmul.f32 %v1189, 0.2
        %v1272 = vmul.f32 %v1191, 0.2
        %v1273 = vmul.f32 %v1195, 0.2
        %v1274 = vmul.f32 %v1197, 0.2
        %v1275 = vmul.f32 %v1201, 0.2
        %v1276 = vmul.f32 %v1203, 0.2
        %v1277 = vmul.f32 %v1207, 0.2
        %v1278 = vmul.f32 %v1209, 0.2
        %v1279 = vmul.f32 %v1213, 0.2
        %v1280 = vmul.f32 %v1215, 0.2
        %v1281 = vmax.f32 %v1027, %v1217
        %v1282 = vmax.f32 %v1029, %v1218
        %v1283 = vmax.f32 %v1033, %v1219
        %v1284 = vmax.f32 %v1035, %v1220
        %v1285 = vmax.f32 %v1039, %v1221
        %v1286 = vmax.f32 %v1041, %v1222
        %v1287 = vmax.f32 %v1045, %v1223
        %v1288 = vmax.f32 %v1047, %v1224
        %v1289 = vmax.f32 %v1051, %v1225
        %v1290 = vmax.f32 %v1053, %v1226
        %v1291 = vmax.f32 %v1057, %v1227
        %v1292 = vmax.f32 %v1059, %v1228
        %v1293 = vmax.f32 %v1063, %v1229
        %v1294 = vmax.f32 %v1065, %v1230
        %v1295 = vmax.f32 %v1069, %v1231
        %v1296 = vmax.f32 %v1071, %v1232
        %v1297 = vmax.f32 %v1075, %v1233
        %v1298 = vmax.f32 %v1077, %v1234
        %v1299 = vmax.f32 %v1081, %v1235
        %v1300 = vmax.f32 %v1083, %v1236
        %v1301 = vmax.f32 %v1087, %v1237
        %v1302 = vmax.f32 %v1089, %v1238
        %v1303 = vmax.f32 %v1093, %v1239
        %v1304 = vmax.f32 %v1095, %v1240
        %v1305 = vmax.f32 %v1099, %v1241
        %v1306 = vmax.f32 %v1101, %v1242
        %v1307 = vmax.f32 %v1105, %v1243
        %v1308 = vmax.f32 %v1107, %v1244
        %v1309 = vmax.f32 %v1111, %v1245
        %v1310 = vmax.f32 %v1113, %v1246
        %v1311 = vmax.f32 %v1117, %v1247
        %v1312 = vmax.f32 %v1119, %v1248
        %v1313 = vmax.f32 %v1123, %v1249
        %v1314 = vmax.f32 %v1125, %v1250
        %v1315 = vmax.f32 %v1129, %v1251
        %v1316 = vmax.f32 %v1131, %v1252
        %v1317 = vmax.f32 %v1135, %v1253
        %v1318 = vmax.f32 %v1137, %v1254
        %v1319 = vmax.f32 %v1141, %v1255
        %v1320 = vmax.f32 %v1143, %v1256
        %v1321 = vmax.f32 %v1147, %v1257
        %v1322 = vmax.f32 %v1149, %v1258
        %v1323 = vmax.f32 %v1153, %v1259
        %v1324 = vmax.f32 %v1155, %v1260
        %v1325 = vmax.f32 %v1159, %v1261
        %v1326 = vmax.f32 %v1161, %v1262
        %v1327 = vmax.f32 %v1165, %v1263
        %v1328 = vmax.f32 %v1167, %v1264
        %v1329 = vmax.f32 %v1171, %v1265
        %v1330 = vmax.f32 %v1173, %v1266
        %v1331 = vmax.f32 %v1177, %v1267
        %v1332 = vmax.f32 %v1179, %v1268
        %v1333 = vmax.f32 %v1183, %v1269
        %v1334 = vmax.f32 %v1185, %v1270
        %v1335 = vmax.f32 %v1189, %v1271
        %v1336 = vmax.f32 %v1191, %v1272
        %v1337 = vmax.f32 %v1195, %v1273
        %v1338 = vmax.f32 %v1197, %v1274
        %v1339 = vmax.f32 %v1201, %v1275
        %v1340 = vmax.f32 %v1203, %v1276
        %v1341 = vmax.f32 %v1207, %v1277
        %v1342 = vmax.f32 %v1209, %v1278
        %v1343 = vmax.f32 %v1213, %v1279
        %v1344 = vmax.f32 %v1215, %v1280
        %v1345 = vld [vmem:[#allocation3] sm:$0xff]
        %v1346 = vld [vmem:[#allocation3 + $0x8] sm:$0xff]
        %v1347 = vld [vmem:[#allocation3 + $0x10] sm:$0xff]
        %v1348 = vld [vmem:[#allocation3 + $0x18] sm:$0xff]
        %v1349 = vld [vmem:[#allocation3 + $0x20] sm:$0xff]
        %v1350 = vld [vmem:[#allocation3 + $0x28] sm:$0xff]
        %v1351 = vld [vmem:[#allocation3 + $0x30] sm:$0xff]
        %v1352 = vld [vmem:[#allocation3 + $0x38] sm:$0xff]
        %v1353 = vld [vmem:[#allocation3 + $0x40] sm:$0xff]
        %v1354 = vld [vmem:[#allocation3 + $0x48] sm:$0xff]
        %v1355 = vld [vmem:[#allocation3 + $0x50] sm:$0xff]
        %v1356 = vld [vmem:[#allocation3 + $0x58] sm:$0xff]
        %v1357 = vld [vmem:[#allocation3 + $0x60] sm:$0xff]
        %v1358 = vld [vmem:[#allocation3 + $0x68] sm:$0xff]
        %v1359 = vld [vmem:[#allocation3 + $0x70] sm:$0xff]
        %v1360 = vld [vmem:[#allocation3 + $0x78] sm:$0xff]
        %v1361 = vld [vmem:[#allocation3 + $0x80] sm:$0xff]
        %v1362 = vld [vmem:[#allocation3 + $0x88] sm:$0xff]
        %v1363 = vld [vmem:[#allocation3 + $0x90] sm:$0xff]
        %v1364 = vld [vmem:[#allocation3 + $0x98] sm:$0xff]
        %v1365 = vld [vmem:[#allocation3 + $0xa0] sm:$0xff]
        %v1366 = vld [vmem:[#allocation3 + $0xa8] sm:$0xff]
        %v1367 = vld [vmem:[#allocation3 + $0xb0] sm:$0xff]
        %v1368 = vld [vmem:[#allocation3 + $0xb8] sm:$0xff]
        %v1369 = vld [vmem:[#allocation3 + $0xc0] sm:$0xff]
        %v1370 = vld [vmem:[#allocation3 + $0xc8] sm:$0xff]
        %v1371 = vld [vmem:[#allocation3 + $0xd0] sm:$0xff]
        %v1372 = vld [vmem:[#allocation3 + $0xd8] sm:$0xff]
        %v1373 = vld [vmem:[#allocation3 + $0xe0] sm:$0xff]
        %v1374 = vld [vmem:[#allocation3 + $0xe8] sm:$0xff]
        %v1375 = vld [vmem:[#allocation3 + $0xf0] sm:$0xff]
        %v1376 = vld [vmem:[#allocation3 + $0xf8] sm:$0xff]
        %v1377 = vld [vmem:[#allocation3 + $0x100] sm:$0xff]
        %v1378 = vld [vmem:[#allocation3 + $0x108] sm:$0xff]
        %v1379 = vld [vmem:[#allocation3 + $0x110] sm:$0xff]
        %v1380 = vld [vmem:[#allocation3 + $0x118] sm:$0xff]
        %v1381 = vld [vmem:[#allocation3 + $0x120] sm:$0xff]
        %v1382 = vld [vmem:[#allocation3 + $0x128] sm:$0xff]
        %v1383 = vld [vmem:[#allocation3 + $0x130] sm:$0xff]
        %v1384 = vld [vmem:[#allocation3 + $0x138] sm:$0xff]
        %v1385 = vld [vmem:[#allocation3 + $0x140] sm:$0xff]
        %v1386 = vld [vmem:[#allocation3 + $0x148] sm:$0xff]
        %v1387 = vld [vmem:[#allocation3 + $0x150] sm:$0xff]
        %v1388 = vld [vmem:[#allocation3 + $0x158] sm:$0xff]
        %v1389 = vld [vmem:[#allocation3 + $0x160] sm:$0xff]
        %v1390 = vld [vmem:[#allocation3 + $0x168] sm:$0xff]
        %v1391 = vld [vmem:[#allocation3 + $0x170] sm:$0xff]
        %v1392 = vld [vmem:[#allocation3 + $0x178] sm:$0xff]
        %v1393 = vld [vmem:[#allocation3 + $0x180] sm:$0xff]
        %v1394 = vld [vmem:[#allocation3 + $0x188] sm:$0xff]
        %v1395 = vld [vmem:[#allocation3 + $0x190] sm:$0xff]
        %v1396 = vld [vmem:[#allocation3 + $0x198] sm:$0xff]
        %v1397 = vld [vmem:[#allocation3 + $0x1a0] sm:$0xff]
        %v1398 = vld [vmem:[#allocation3 + $0x1a8] sm:$0xff]
        %v1399 = vld [vmem:[#allocation3 + $0x1b0] sm:$0xff]
        %v1400 = vld [vmem:[#allocation3 + $0x1b8] sm:$0xff]
        %v1401 = vld [vmem:[#allocation3 + $0x1c0] sm:$0xff]
        %v1402 = vld [vmem:[#allocation3 + $0x1c8] sm:$0xff]
        %v1403 = vld [vmem:[#allocation3 + $0x1d0] sm:$0xff]
        %v1404 = vld [vmem:[#allocation3 + $0x1d8] sm:$0xff]
        %v1405 = vld [vmem:[#allocation3 + $0x1e0] sm:$0xff]
        %v1406 = vld [vmem:[#allocation3 + $0x1e8] sm:$0xff]
        %v1407 = vld [vmem:[#allocation3 + $0x1f0] sm:$0xff]
        %v1408 = vld [vmem:[#allocation3 + $0x1f8] sm:$0xff]
        %v1409 = vld [vmem:[%s6] sm:$0x3]
        %v1411 = vlaneseq
        %v1412 = vshrl.u32 %v1411, 7
        %v1413 = vsub.s32 0, %v1412
        %v1414 = vrot.slane %v1409, %v1413
        %v1415 = vlaneseq
        %v1416 = vshrl.u32 %v1415, 7
        %v1417 = vsub.s32 1, %v1416
        %v1418 = vrot.slane %v1409, %v1417
        %1421 = vmatprep.subr.mxu0 %v1346
        %1422 = vmatpush1.msra.mxu0 %v1345
        %1423 = vmatprep.subr.mxu0 %v1348
        %1424 = vmatpush1.msra.mxu0 %v1347
        %1425 = vmatprep.subr.mxu0 %v1350
        %1426 = vmatpush1.msra.mxu0 %v1349
        %1427 = vmatprep.subr.mxu0 %v1352
        %1428 = vmatpush1.msra.mxu0 %v1351
        %1429 = vmatprep.subr.mxu0 %v1354
        %1430 = vmatpush1.msra.mxu0 %v1353
        %1431 = vmatprep.subr.mxu0 %v1356
        %1432 = vmatpush1.msra.mxu0 %v1355
        %1433 = vmatprep.subr.mxu0 %v1358
        %1434 = vmatpush1.msra.mxu0 %v1357
        %1435 = vmatprep.subr.mxu0 %v1360
        %1436 = vmatpush1.msra.mxu0 %v1359
        %1437 = vmatprep.subr.mxu0 %v1362
        %1438 = vmatpush1.msra.mxu0 %v1361
        %1439 = vmatprep.subr.mxu0 %v1364
        %1440 = vmatpush1.msra.mxu0 %v1363
        %1441 = vmatprep.subr.mxu0 %v1366
        %1442 = vmatpush1.msra.mxu0 %v1365
        %1443 = vmatprep.subr.mxu0 %v1368
        %1444 = vmatpush1.msra.mxu0 %v1367
        %1445 = vmatprep.subr.mxu0 %v1370
        %1446 = vmatpush1.msra.mxu0 %v1369
        %1447 = vmatprep.subr.mxu0 %v1372
        %1448 = vmatpush1.msra.mxu0 %v1371
        %1449 = vmatprep.subr.mxu0 %v1374
        %1450 = vmatpush1.msra.mxu0 %v1373
        %1451 = vmatprep.subr.mxu0 %v1376
        %1452 = vmatpush1.msra.mxu0 %v1375
        %1453 = vmatprep.subr.mxu0 %v1378
        %1454 = vmatpush1.msra.mxu0 %v1377
        %1455 = vmatprep.subr.mxu0 %v1380
        %1456 = vmatpush1.msra.mxu0 %v1379
        %1457 = vmatprep.subr.mxu0 %v1382
        %1458 = vmatpush1.msra.mxu0 %v1381
        %1459 = vmatprep.subr.mxu0 %v1384
        %1460 = vmatpush1.msra.mxu0 %v1383
        %1461 = vmatprep.subr.mxu0 %v1386
        %1462 = vmatpush1.msra.mxu0 %v1385
        %1463 = vmatprep.subr.mxu0 %v1388
        %1464 = vmatpush1.msra.mxu0 %v1387
        %1465 = vmatprep.subr.mxu0 %v1390
        %1466 = vmatpush1.msra.mxu0 %v1389
        %1467 = vmatprep.subr.mxu0 %v1392
        %1468 = vmatpush1.msra.mxu0 %v1391
        %1469 = vmatprep.subr.mxu0 %v1394
        %1470 = vmatpush1.msra.mxu0 %v1393
        %1471 = vmatprep.subr.mxu0 %v1396
        %1472 = vmatpush1.msra.mxu0 %v1395
        %1473 = vmatprep.subr.mxu0 %v1398
        %1474 = vmatpush1.msra.mxu0 %v1397
        %1475 = vmatprep.subr.mxu0 %v1400
        %1476 = vmatpush1.msra.mxu0 %v1399
        %1477 = vmatprep.subr.mxu0 %v1402
        %1478 = vmatpush1.msra.mxu0 %v1401
        %1479 = vmatprep.subr.mxu0 %v1404
        %1480 = vmatpush1.msra.mxu0 %v1403
        %1481 = vmatprep.subr.mxu0 %v1406
        %1482 = vmatpush1.msra.mxu0 %v1405
        %1483 = vmatprep.subr.mxu0 %v1408
        %1484 = vmatpush1.msra.mxu0 %v1407
        %1485 = vmatprep.mubr.f32.mxu0 %v1282
        %1486 = vmatmul.mubr.f32.gmra.mrb[0].mxu0 %v1281
        %v1487 = vpop.f32.mrb[0].mxu0
        %v1488 = vadd.f32 %v1414, %v1487
        %v1489 = vpop.f32.mrb[0].mxu0
        %v1490 = vadd.f32 %v1418, %v1489
        %1491 = vmatprep.mubr.f32.mxu0 %v1284
        %1492 = vmatmul.mubr.f32.gmra.mrb[0].mxu0 %v1283
        %v1493 = vpop.f32.mrb[0].mxu0
        %v1494 = vadd.f32 %v1414, %v1493
        %v1495 = vpop.f32.mrb[0].mxu0
        %v1496 = vadd.f32 %v1418, %v1495
        %1497 = vmatprep.mubr.f32.mxu0 %v1286
        %1498 = vmatmul.mubr.f32.gmra.mrb[0].mxu0 %v1285
        %v1499 = vpop.f32.mrb[0].mxu0
        %v1500 = vadd.f32 %v1414, %v1499
        %v1501 = vpop.f32.mrb[0].mxu0
        %v1502 = vadd.f32 %v1418, %v1501
        %1503 = vmatprep.mubr.f32.mxu0 %v1288
        %1504 = vmatmul.mubr.f32.gmra.mrb[0].mxu0 %v1287
        %v1505 = vpop.f32.mrb[0].mxu0
        %v1506 = vadd.f32 %v1414, %v1505
        %v1507 = vpop.f32.mrb[0].mxu0
        %v1508 = vadd.f32 %v1418, %v1507
        %1509 = vmatprep.mubr.f32.mxu0 %v1290
        %1510 = vmatmul.mubr.f32.gmra.mrb[0].mxu0 %v1289
        %v1511 = vpop.f32.mrb[0].mxu0
        %v1512 = vadd.f32 %v1414, %v1511
        %v1513 = vpop.f32.mrb[0].mxu0
        %v1514 = vadd.f32 %v1418, %v1513
        %1515 = vmatprep.mubr.f32.mxu0 %v1292
        %1516 = vmatmul.mubr.f32.gmra.mrb[0].mxu0 %v1291
        %v1517 = vpop.f32.mrb[0].mxu0
        %v1518 = vadd.f32 %v1414, %v1517
        %v1519 = vpop.f32.mrb[0].mxu0
        %v1520 = vadd.f32 %v1418, %v1519
        %1521 = vmatprep.mubr.f32.mxu0 %v1294
        %1522 = vmatmul.mubr.f32.gmra.mrb[0].mxu0 %v1293
        %v1523 = vpop.f32.mrb[0].mxu0
        %v1524 = vadd.f32 %v1414, %v1523
        %v1525 = vpop.f32.mrb[0].mxu0
        %v1526 = vadd.f32 %v1418, %v1525
        %1527 = vmatprep.mubr.f32.mxu0 %v1296
        %1528 = vmatmul.mubr.f32.gmra.mrb[0].mxu0 %v1295
        %v1529 = vpop.f32.mrb[0].mxu0
        %v1530 = vadd.f32 %v1414, %v1529
        %v1531 = vpop.f32.mrb[0].mxu0
        %v1532 = vadd.f32 %v1418, %v1531
        %1533 = vmatprep.mubr.f32.mxu0 %v1298
        %1534 = vmatmul.mubr.f32.gmra.mrb[0].mxu0 %v1297
        %v1535 = vpop.f32.mrb[0].mxu0
        %v1536 = vadd.f32 %v1414, %v1535
        %v1537 = vpop.f32.mrb[0].mxu0
        %v1538 = vadd.f32 %v1418, %v1537
        %1539 = vmatprep.mubr.f32.mxu0 %v1300
        %1540 = vmatmul.mubr.f32.gmra.mrb[0].mxu0 %v1299
        %v1541 = vpop.f32.mrb[0].mxu0
        %v1542 = vadd.f32 %v1414, %v1541
        %v1543 = vpop.f32.mrb[0].mxu0
        %v1544 = vadd.f32 %v1418, %v1543
        %1545 = vmatprep.mubr.f32.mxu0 %v1302
        %1546 = vmatmul.mubr.f32.gmra.mrb[0].mxu0 %v1301
        %v1547 = vpop.f32.mrb[0].mxu0
        %v1548 = vadd.f32 %v1414, %v1547
        %v1549 = vpop.f32.mrb[0].mxu0
        %v1550 = vadd.f32 %v1418, %v1549
        %1551 = vmatprep.mubr.f32.mxu0 %v1304
        %1552 = vmatmul.mubr.f32.gmra.mrb[0].mxu0 %v1303
        %v1553 = vpop.f32.mrb[0].mxu0
        %v1554 = vadd.f32 %v1414, %v1553
        %v1555 = vpop.f32.mrb[0].mxu0
        %v1556 = vadd.f32 %v1418, %v1555
        %1557 = vmatprep.mubr.f32.mxu0 %v1306
        %1558 = vmatmul.mubr.f32.gmra.mrb[0].mxu0 %v1305
        %v1559 = vpop.f32.mrb[0].mxu0
        %v1560 = vadd.f32 %v1414, %v1559
        %v1561 = vpop.f32.mrb[0].mxu0
        %v1562 = vadd.f32 %v1418, %v1561
        %1563 = vmatprep.mubr.f32.mxu0 %v1308
        %1564 = vmatmul.mubr.f32.gmra.mrb[0].mxu0 %v1307
        %v1565 = vpop.f32.mrb[0].mxu0
        %v1566 = vadd.f32 %v1414, %v1565
        %v1567 = vpop.f32.mrb[0].mxu0
        %v1568 = vadd.f32 %v1418, %v1567
        %1569 = vmatprep.mubr.f32.mxu0 %v1310
        %1570 = vmatmul.mubr.f32.gmra.mrb[0].mxu0 %v1309
        %v1571 = vpop.f32.mrb[0].mxu0
        %v1572 = vadd.f32 %v1414, %v1571
        %v1573 = vpop.f32.mrb[0].mxu0
        %v1574 = vadd.f32 %v1418, %v1573
        %1575 = vmatprep.mubr.f32.mxu0 %v1312
        %1576 = vmatmul.mubr.f32.gmra.mrb[0].mxu0 %v1311
        %v1577 = vpop.f32.mrb[0].mxu0
        %v1578 = vadd.f32 %v1414, %v1577
        %v1579 = vpop.f32.mrb[0].mxu0
        %v1580 = vadd.f32 %v1418, %v1579
        %1581 = vmatprep.mubr.f32.mxu0 %v1314
        %1582 = vmatmul.mubr.f32.gmra.mrb[0].mxu0 %v1313
        %v1583 = vpop.f32.mrb[0].mxu0
        %v1584 = vadd.f32 %v1414, %v1583
        %v1585 = vpop.f32.mrb[0].mxu0
        %v1586 = vadd.f32 %v1418, %v1585
        %1587 = vmatprep.mubr.f32.mxu0 %v1316
        %1588 = vmatmul.mubr.f32.gmra.mrb[0].mxu0 %v1315
        %v1589 = vpop.f32.mrb[0].mxu0
        %v1590 = vadd.f32 %v1414, %v1589
        %v1591 = vpop.f32.mrb[0].mxu0
        %v1592 = vadd.f32 %v1418, %v1591
        %1593 = vmatprep.mubr.f32.mxu0 %v1318
        %1594 = vmatmul.mubr.f32.gmra.mrb[0].mxu0 %v1317
        %v1595 = vpop.f32.mrb[0].mxu0
        %v1596 = vadd.f32 %v1414, %v1595
        %v1597 = vpop.f32.mrb[0].mxu0
        %v1598 = vadd.f32 %v1418, %v1597
        %1599 = vmatprep.mubr.f32.mxu0 %v1320
        %1600 = vmatmul.mubr.f32.gmra.mrb[0].mxu0 %v1319
        %v1601 = vpop.f32.mrb[0].mxu0
        %v1602 = vadd.f32 %v1414, %v1601
        %v1603 = vpop.f32.mrb[0].mxu0
        %v1604 = vadd.f32 %v1418, %v1603
        %1605 = vmatprep.mubr.f32.mxu0 %v1322
        %1606 = vmatmul.mubr.f32.gmra.mrb[0].mxu0 %v1321
        %v1607 = vpop.f32.mrb[0].mxu0
        %v1608 = vadd.f32 %v1414, %v1607
        %v1609 = vpop.f32.mrb[0].mxu0
        %v1610 = vadd.f32 %v1418, %v1609
        %1611 = vmatprep.mubr.f32.mxu0 %v1324
        %1612 = vmatmul.mubr.f32.gmra.mrb[0].mxu0 %v1323
        %v1613 = vpop.f32.mrb[0].mxu0
        %v1614 = vadd.f32 %v1414, %v1613
        %v1615 = vpop.f32.mrb[0].mxu0
        %v1616 = vadd.f32 %v1418, %v1615
        %1617 = vmatprep.mubr.f32.mxu0 %v1326
        %1618 = vmatmul.mubr.f32.gmra.mrb[0].mxu0 %v1325
        %v1619 = vpop.f32.mrb[0].mxu0
        %v1620 = vadd.f32 %v1414, %v1619
        %v1621 = vpop.f32.mrb[0].mxu0
        %v1622 = vadd.f32 %v1418, %v1621
        %1623 = vmatprep.mubr.f32.mxu0 %v1328
        %1624 = vmatmul.mubr.f32.gmra.mrb[0].mxu0 %v1327
        %v1625 = vpop.f32.mrb[0].mxu0
        %v1626 = vadd.f32 %v1414, %v1625
        %v1627 = vpop.f32.mrb[0].mxu0
        %v1628 = vadd.f32 %v1418, %v1627
        %1629 = vmatprep.mubr.f32.mxu0 %v1330
        %1630 = vmatmul.mubr.f32.gmra.mrb[0].mxu0 %v1329
        %v1631 = vpop.f32.mrb[0].mxu0
        %v1632 = vadd.f32 %v1414, %v1631
        %v1633 = vpop.f32.mrb[0].mxu0
        %v1634 = vadd.f32 %v1418, %v1633
        %1635 = vmatprep.mubr.f32.mxu0 %v1332
        %1636 = vmatmul.mubr.f32.gmra.mrb[0].mxu0 %v1331
        %v1637 = vpop.f32.mrb[0].mxu0
        %v1638 = vadd.f32 %v1414, %v1637
        %v1639 = vpop.f32.mrb[0].mxu0
        %v1640 = vadd.f32 %v1418, %v1639
        %1641 = vmatprep.mubr.f32.mxu0 %v1334
        %1642 = vmatmul.mubr.f32.gmra.mrb[0].mxu0 %v1333
        %v1643 = vpop.f32.mrb[0].mxu0
        %v1644 = vadd.f32 %v1414, %v1643
        %v1645 = vpop.f32.mrb[0].mxu0
        %v1646 = vadd.f32 %v1418, %v1645
        %1647 = vmatprep.mubr.f32.mxu0 %v1336
        %1648 = vmatmul.mubr.f32.gmra.mrb[0].mxu0 %v1335
        %v1649 = vpop.f32.mrb[0].mxu0
        %v1650 = vadd.f32 %v1414, %v1649
        %v1651 = vpop.f32.mrb[0].mxu0
        %v1652 = vadd.f32 %v1418, %v1651
        %1653 = vmatprep.mubr.f32.mxu0 %v1338
        %1654 = vmatmul.mubr.f32.gmra.mrb[0].mxu0 %v1337
        %v1655 = vpop.f32.mrb[0].mxu0
        %v1656 = vadd.f32 %v1414, %v1655
        %v1657 = vpop.f32.mrb[0].mxu0
        %v1658 = vadd.f32 %v1418, %v1657
        %1659 = vmatprep.mubr.f32.mxu0 %v1340
        %1660 = vmatmul.mubr.f32.gmra.mrb[0].mxu0 %v1339
        %v1661 = vpop.f32.mrb[0].mxu0
        %v1662 = vadd.f32 %v1414, %v1661
        %v1663 = vpop.f32.mrb[0].mxu0
        %v1664 = vadd.f32 %v1418, %v1663
        %1665 = vmatprep.mubr.f32.mxu0 %v1342
        %1666 = vmatmul.mubr.f32.gmra.mrb[0].mxu0 %v1341
        %v1667 = vpop.f32.mrb[0].mxu0
        %v1668 = vadd.f32 %v1414, %v1667
        %v1669 = vpop.f32.mrb[0].mxu0
        %v1670 = vadd.f32 %v1418, %v1669
        %1671 = vmatprep.mubr.f32.mxu0 %v1344
        %1672 = vmatmul.mubr.f32.gmra.mrb[0].mxu0 %v1343
        %v1673 = vpop.f32.mrb[0].mxu0
        %v1674 = vadd.f32 %v1414, %v1673
        %v1675 = vpop.f32.mrb[0].mxu0
        %v1676 = vadd.f32 %v1418, %v1675
        %1677 = vdwg.mxu0
        %v1678 = vmul.f32 %v1488, 0.2
        %v1679 = vmul.f32 %v1490, 0.2
        %v1680 = vmul.f32 %v1494, 0.2
        %v1681 = vmul.f32 %v1496, 0.2
        %v1682 = vmul.f32 %v1500, 0.2
        %v1683 = vmul.f32 %v1502, 0.2
        %v1684 = vmul.f32 %v1506, 0.2
        %v1685 = vmul.f32 %v1508, 0.2
        %v1686 = vmul.f32 %v1512, 0.2
        %v1687 = vmul.f32 %v1514, 0.2
        %v1688 = vmul.f32 %v1518, 0.2
        %v1689 = vmul.f32 %v1520, 0.2
        %v1690 = vmul.f32 %v1524, 0.2
        %v1691 = vmul.f32 %v1526, 0.2
        %v1692 = vmul.f32 %v1530, 0.2
        %v1693 = vmul.f32 %v1532, 0.2
        %v1694 = vmul.f32 %v1536, 0.2
        %v1695 = vmul.f32 %v1538, 0.2
        %v1696 = vmul.f32 %v1542, 0.2
        %v1697 = vmul.f32 %v1544, 0.2
        %v1698 = vmul.f32 %v1548, 0.2
        %v1699 = vmul.f32 %v1550, 0.2
        %v1700 = vmul.f32 %v1554, 0.2
        %v1701 = vmul.f32 %v1556, 0.2
        %v1702 = vmul.f32 %v1560, 0.2
        %v1703 = vmul.f32 %v1562, 0.2
        %v1704 = vmul.f32 %v1566, 0.2
        %v1705 = vmul.f32 %v1568, 0.2
        %v1706 = vmul.f32 %v1572, 0.2
        %v1707 = vmul.f32 %v1574, 0.2
        %v1708 = vmul.f32 %v1578, 0.2
        %v1709 = vmul.f32 %v1580, 0.2
        %v1710 = vmul.f32 %v1584, 0.2
        %v1711 = vmul.f32 %v1586, 0.2
        %v1712 = vmul.f32 %v1590, 0.2
        %v1713 = vmul.f32 %v1592, 0.2
        %v1714 = vmul.f32 %v1596, 0.2
        %v1715 = vmul.f32 %v1598, 0.2
        %v1716 = vmul.f32 %v1602, 0.2
        %v1717 = vmul.f32 %v1604, 0.2
        %v1718 = vmul.f32 %v1608, 0.2
        %v1719 = vmul.f32 %v1610, 0.2
        %v1720 = vmul.f32 %v1614, 0.2
        %v1721 = vmul.f32 %v1616, 0.2
        %v1722 = vmul.f32 %v1620, 0.2
        %v1723 = vmul.f32 %v1622, 0.2
        %v1724 = vmul.f32 %v1626, 0.2
        %v1725 = vmul.f32 %v1628, 0.2
        %v1726 = vmul.f32 %v1632, 0.2
        %v1727 = vmul.f32 %v1634, 0.2
        %v1728 = vmul.f32 %v1638, 0.2
        %v1729 = vmul.f32 %v1640, 0.2
        %v1730 = vmul.f32 %v1644, 0.2
        %v1731 = vmul.f32 %v1646, 0.2
        %v1732 = vmul.f32 %v1650, 0.2
        %v1733 = vmul.f32 %v1652, 0.2
        %v1734 = vmul.f32 %v1656, 0.2
        %v1735 = vmul.f32 %v1658, 0.2
        %v1736 = vmul.f32 %v1662, 0.2
        %v1737 = vmul.f32 %v1664, 0.2
        %v1738 = vmul.f32 %v1668, 0.2
        %v1739 = vmul.f32 %v1670, 0.2
        %v1740 = vmul.f32 %v1674, 0.2
        %v1741 = vmul.f32 %v1676, 0.2
        %v1742 = vmax.f32 %v1488, %v1678
        %v1743 = vmax.f32 %v1490, %v1679
        %v1744 = vmax.f32 %v1494, %v1680
        %v1745 = vmax.f32 %v1496, %v1681
        %v1746 = vmax.f32 %v1500, %v1682
        %v1747 = vmax.f32 %v1502, %v1683
        %v1748 = vmax.f32 %v1506, %v1684
        %v1749 = vmax.f32 %v1508, %v1685
        %v1750 = vmax.f32 %v1512, %v1686
        %v1751 = vmax.f32 %v1514, %v1687
        %v1752 = vmax.f32 %v1518, %v1688
        %v1753 = vmax.f32 %v1520, %v1689
        %v1754 = vmax.f32 %v1524, %v1690
        %v1755 = vmax.f32 %v1526, %v1691
        %v1756 = vmax.f32 %v1530, %v1692
        %v1757 = vmax.f32 %v1532, %v1693
        %v1758 = vmax.f32 %v1536, %v1694
        %v1759 = vmax.f32 %v1538, %v1695
        %v1760 = vmax.f32 %v1542, %v1696
        %v1761 = vmax.f32 %v1544, %v1697
        %v1762 = vmax.f32 %v1548, %v1698
        %v1763 = vmax.f32 %v1550, %v1699
        %v1764 = vmax.f32 %v1554, %v1700
        %v1765 = vmax.f32 %v1556, %v1701
        %v1766 = vmax.f32 %v1560, %v1702
        %v1767 = vmax.f32 %v1562, %v1703
        %v1768 = vmax.f32 %v1566, %v1704
        %v1769 = vmax.f32 %v1568, %v1705
        %v1770 = vmax.f32 %v1572, %v1706
        %v1771 = vmax.f32 %v1574, %v1707
        %v1772 = vmax.f32 %v1578, %v1708
        %v1773 = vmax.f32 %v1580, %v1709
        %v1774 = vmax.f32 %v1584, %v1710
        %v1775 = vmax.f32 %v1586, %v1711
        %v1776 = vmax.f32 %v1590, %v1712
        %v1777 = vmax.f32 %v1592, %v1713
        %v1778 = vmax.f32 %v1596, %v1714
        %v1779 = vmax.f32 %v1598, %v1715
        %v1780 = vmax.f32 %v1602, %v1716
        %v1781 = vmax.f32 %v1604, %v1717
        %v1782 = vmax.f32 %v1608, %v1718
        %v1783 = vmax.f32 %v1610, %v1719
        %v1784 = vmax.f32 %v1614, %v1720
        %v1785 = vmax.f32 %v1616, %v1721
        %v1786 = vmax.f32 %v1620, %v1722
        %v1787 = vmax.f32 %v1622, %v1723
        %v1788 = vmax.f32 %v1626, %v1724
        %v1789 = vmax.f32 %v1628, %v1725
        %v1790 = vmax.f32 %v1632, %v1726
        %v1791 = vmax.f32 %v1634, %v1727
        %v1792 = vmax.f32 %v1638, %v1728
        %v1793 = vmax.f32 %v1640, %v1729
        %v1794 = vmax.f32 %v1644, %v1730
        %v1795 = vmax.f32 %v1646, %v1731
        %v1796 = vmax.f32 %v1650, %v1732
        %v1797 = vmax.f32 %v1652, %v1733
        %v1798 = vmax.f32 %v1656, %v1734
        %v1799 = vmax.f32 %v1658, %v1735
        %v1800 = vmax.f32 %v1662, %v1736
        %v1801 = vmax.f32 %v1664, %v1737
        %v1802 = vmax.f32 %v1668, %v1738
        %v1803 = vmax.f32 %v1670, %v1739
        %v1804 = vmax.f32 %v1674, %v1740
        %v1805 = vmax.f32 %v1676, %v1741
        %v1806 = vld [vmem:[%s7] sm:$0x3]
        %v1807 = vld [vmem:[#allocation2] sm:$0x1]
        %1809 = vset.pattern.permute.xlu0 0
        %1810 = vperm.xlu0 %1809, %v1807
        %v1811 = vpop.permute.xlu0 %1810
        %v1813 = vlaneseq
        %v1814 = vshrl.u32 %v1813, 7
        %v1815 = vsub.s32 0, %v1814
        %v1816 = vrot.slane %v1811, %v1815
        %v1818 = vlaneseq
        %v1819 = vshrl.u32 %v1818, 7
        %v1820 = vsub.s32 0, %v1819
        %v1821 = vrot.slane %v1806, %v1820
        %v1822 = vlaneseq
        %v1823 = vshrl.u32 %v1822, 7
        %v1824 = vsub.s32 1, %v1823
        %v1825 = vrot.slane %v1806, %v1824
        %1828 = vmatprep.subr.mxu0 %v1743
        %1829 = vmatpush1.xpose.msra.mxu0 %v1742
        %1830 = vmatprep.subr.mxu0 %v1745
        %1831 = vmatpush1.xpose.msra.mxu0 %v1744
        %1832 = vmatprep.subr.mxu0 %v1747
        %1833 = vmatpush1.xpose.msra.mxu0 %v1746
        %1834 = vmatprep.subr.mxu0 %v1749
        %1835 = vmatpush1.xpose.msra.mxu0 %v1748
        %1836 = vmatprep.subr.mxu0 %v1751
        %1837 = vmatpush1.xpose.msra.mxu0 %v1750
        %1838 = vmatprep.subr.mxu0 %v1753
        %1839 = vmatpush1.xpose.msra.mxu0 %v1752
        %1840 = vmatprep.subr.mxu0 %v1755
        %1841 = vmatpush1.xpose.msra.mxu0 %v1754
        %1842 = vmatprep.subr.mxu0 %v1757
        %1843 = vmatpush1.xpose.msra.mxu0 %v1756
        %1844 = vmatprep.subr.mxu0 %v1759
        %1845 = vmatpush1.xpose.msra.mxu0 %v1758
        %1846 = vmatprep.subr.mxu0 %v1761
        %1847 = vmatpush1.xpose.msra.mxu0 %v1760
        %1848 = vmatprep.subr.mxu0 %v1763
        %1849 = vmatpush1.xpose.msra.mxu0 %v1762
        %1850 = vmatprep.subr.mxu0 %v1765
        %1851 = vmatpush1.xpose.msra.mxu0 %v1764
        %1852 = vmatprep.subr.mxu0 %v1767
        %1853 = vmatpush1.xpose.msra.mxu0 %v1766
        %1854 = vmatprep.subr.mxu0 %v1769
        %1855 = vmatpush1.xpose.msra.mxu0 %v1768
        %1856 = vmatprep.subr.mxu0 %v1771
        %1857 = vmatpush1.xpose.msra.mxu0 %v1770
        %1858 = vmatprep.subr.mxu0 %v1773
        %1859 = vmatpush1.xpose.msra.mxu0 %v1772
        %1860 = vmatprep.subr.mxu0 %v1775
        %1861 = vmatpush1.xpose.msra.mxu0 %v1774
        %1862 = vmatprep.subr.mxu0 %v1777
        %1863 = vmatpush1.xpose.msra.mxu0 %v1776
        %1864 = vmatprep.subr.mxu0 %v1779
        %1865 = vmatpush1.xpose.msra.mxu0 %v1778
        %1866 = vmatprep.subr.mxu0 %v1781
        %1867 = vmatpush1.xpose.msra.mxu0 %v1780
        %1868 = vmatprep.subr.mxu0 %v1783
        %1869 = vmatpush1.xpose.msra.mxu0 %v1782
        %1870 = vmatprep.subr.mxu0 %v1785
        %1871 = vmatpush1.xpose.msra.mxu0 %v1784
        %1872 = vmatprep.subr.mxu0 %v1787
        %1873 = vmatpush1.xpose.msra.mxu0 %v1786
        %1874 = vmatprep.subr.mxu0 %v1789
        %1875 = vmatpush1.xpose.msra.mxu0 %v1788
        %1876 = vmatprep.subr.mxu0 %v1791
        %1877 = vmatpush1.xpose.msra.mxu0 %v1790
        %1878 = vmatprep.subr.mxu0 %v1793
        %1879 = vmatpush1.xpose.msra.mxu0 %v1792
        %1880 = vmatprep.subr.mxu0 %v1795
        %1881 = vmatpush1.xpose.msra.mxu0 %v1794
        %1882 = vmatprep.subr.mxu0 %v1797
        %1883 = vmatpush1.xpose.msra.mxu0 %v1796
        %1884 = vmatprep.subr.mxu0 %v1799
        %1885 = vmatpush1.xpose.msra.mxu0 %v1798
        %1886 = vmatprep.subr.mxu0 %v1801
        %1887 = vmatpush1.xpose.msra.mxu0 %v1800
        %1888 = vmatprep.subr.mxu0 %v1803
        %1889 = vmatpush1.xpose.msra.mxu0 %v1802
        %1890 = vmatprep.subr.mxu0 %v1805
        %1891 = vmatpush1.xpose.msra.mxu0 %v1804
        %1892 = vmatprep.mubr.f32.mxu0 %v1825
        %1893 = vmatmul.mubr.f32.gmra.mrb[0].mxu0 %v1821
        %v1894 = vpop.f32.mrb[0].mxu0
        %v1895 = vadd.f32 %v1816, %v1894
        %v1896 = vpop.f32.mrb[0].mxu0
        %v1897 = vadd.f32 %v1816, %v1896
        %1898 = vdwg.mxu0
        %v1899 = vand.u32 2147483647, %v1895
        %v1900 = vand.u32 2147483647, %v1897
        %v1901 = vsub.f32 0.0, %v1899
        %v1902 = vsub.f32 0.0, %v1900
        %v1903 = vmul.f32 %v1901, 1.442695
        %v1904 = vpow.pop %v1903
        %v1905 = vmul.f32 %v1902, 1.442695
        %v1906 = vpow.pop %v1905
        %v1907 = vadd.f32 %v1904, 1.0
        %v1908 = vadd.f32 %v1906, 1.0
        %v1909 = vrcp.pop %v1907
        %v1910 = vrcp.pop %v1908
        %vm1911 = vcmp.ge.f32.partialorder %v1895, 0.0
        %vm1912 = vcmp.ge.f32.partialorder %v1897, 0.0
        %v1913 = vmul.f32 %v1904, %v1909
        %v1914 = vmul.f32 %v1906, %v1910
        %v1915 = vsel %vm1911, %v1909, %v1913
        %v1916 = vsel %vm1912, %v1910, %v1914
        %v1919 = vcombine.low %v1915, %v1916
        %v1921 = vunpack.c.l.s4 1966171168
        %v1922 = vunpack.c.0.s8 %v1921
        %v1923 = vlaneseq
        %v1924 = vshrl.u32 %v1923, 7
        %v1925 = vsub.s32 %v1922, %v1924
        %v1926 = vrot.slane %v1919, %v1925
        %v1928 = vunpack.c.l.s4 1966171168
        %v1929 = vunpack.c.0.s8 %v1928
        %v1930 = vlaneseq
        %v1931 = vshrl.u32 %v1930, 7
        %v1932 = vsub.s32 %v1929, %v1931
        %v1933 = vrot.slane %v1926, %v1932
        %v1935 = vlaneseq
        %vm1936 = vcmp.ge.s32.totalorder %v1935, 0
        %vm1937 = vcmp.lt.s32.totalorder %v1935, 256
        %vm1938 = vmand %vm1936, %vm1937
        %1939 = vst.msk [vmem:[%s343] sm:$0x3] %vm1938, %v1933
        %s1940 = sand.u32 %s228, 1
        %s1941 = scalar_lea.sflag [#allocation5], %s1940
        %s1942 = sand.u32 %s228, 1
        %s1943 = smul.addr %s1942, 2
        %s1944 = scalar_lea.vmem [#allocation6], %s1943
        // Predicated region
        $region61: #{discriminator_forward.1} parent=55 // pred_check
          %p1945 = pneg %p238
        $region62: #{discriminator_forward.1} parent=55 // pred_check_branch
          %1947 = sbr.rel (%p1945) target = $region64
        $region63: #{discriminator_forward.1} parent=55 // pred_region
          %s1949 = ssub.s32 32, 32
          %1950 = vsyncadd %s1941, %s1949
          %s1951 = smul.addr %s26, 2
          %s1952 = smul.addr %s1951, 16
          %s1953 = scalar_lea.hbm %s9, %s1952
          %s1955 = sshll.u32 %s1944, 4
          %s1956 = int_to_ptr.vmem [resolvable:$true] %s1955
          %1958 = dma.vmem_to_hbm [thread:$0]  %s1956, 32, %s1953, %s1941
        $region64: #{discriminator_forward.1} parent=55 // pred_fallthru
          _
      $region56: #{discriminator_forward.1} parent=5 // pred_fallthru
        _
      %p1959 = scmp.le.s32.totalorder 2, %s21
      // Predicated region
      $region65: #{discriminator_forward.1} parent=5 // pred_check
        %p1960 = pneg %p1959
      $region66: #{discriminator_forward.1} parent=5 // pred_check_branch
        %1962 = sbr.rel (%p1960) target = $region68
      $region67: #{discriminator_forward.1} parent=5 // pred_region
        %s1963 = ssub.s32 %s21, 2
        // Predicated region
        $region69: #{discriminator_forward.1} parent=67 // pred_check
          %p1964 = pneg %p244
        $region70: #{discriminator_forward.1} parent=67 // pred_check_branch
          %1966 = sbr.rel (%p1964) target = $region72
        $region71: #{discriminator_forward.1} parent=67 // pred_region
          %s1967 = sand.u32 %s229, 1
          %s1968 = scalar_lea.sflag [#allocation5], %s1967
          %s1969 = sand.u32 %s229, 1
          %s1970 = smul.addr %s1969, 2
          %s1971 = scalar_lea.vmem [#allocation6], %s1970
          %1972 = dma.done %s1968, 32
        $region72: #{discriminator_forward.1} parent=67 // pred_fallthru
          _
      $region68: #{discriminator_forward.1} parent=5 // pred_fallthru
        _
    $region6: #{discriminator_forward.1} parent=1 // loop_footer
      %s25 = sadd.s32 1, %s21
    $region7: #{discriminator_forward.1} parent=1 // loop_footer_branch
      %20 = sbr.rel target = $region3
    $region8: #{discriminator_forward.1} parent=1 // loop_exit
      _
    %1973 = vsyncpa [#allocation4], 1
    %s1974 = scalar_lea.sflag [#allocation4], 1
    %1975 = vsyncpa %s1974, 1
    %1976 = vsyncpa [#allocation5], 1
    %s1977 = scalar_lea.sflag [#allocation5], 1
    %1978 = vsyncpa %s1977, 1

</llo_original>
